<compile_context>
chip_gen: v5e
topology: v5e:2x2
jax: 0.10.0
libtpu: 0.0.40
codegen_flags: <defaults>
</compile_context>

<pallas_src>
import jax
import jax.numpy as jnp
from jax.experimental import pallas as pl
from jax.experimental.pallas import tpu as pltpu  # noqa: F401  (TPU backend assumed)

# ---------------- static config (small synthetic shapes) ----------------
L        = 3          # number of decoder layers (hs.shape[0])
BS       = 2          # batch
NUM_VEC  = 8          # num_vec_one2one (inference: total num_vec == one2one)
NUM_PTS  = 4          # num_pts_per_vec
Q        = NUM_VEC * NUM_PTS          # 32
D        = 32         # embed_dims
NUM_CLS  = 3          # cls branch output classes
CODE     = 2          # z_cfg['gt_z_flag'] = False -> (x, y)
SEGM_LVL = 2          # number of segm prediction levels from IMPNet
SEGM_CLS = 4          # segm cls scores channels (>=3 so [..., :3] is valid)
BEV_H = BEV_W = 16
EPS = 1e-5
DN_PAD_SIZE = 0       # mask_dict is None at inference

LD       = L * D                      # 96   lanes packed as (lvl, d)
REG_ROWS = NUM_PTS * BS * NUM_VEC     # 64   rows packed as (pt, b, vec)
CLS_ROWS = BS * NUM_VEC               # 16   rows packed as (b, vec)
REG_OUT  = L * CODE                   # 6    lanes (lvl, code)
CLS_OUT  = L * NUM_CLS                # 9    lanes (lvl, cls)
HS_CLS_W = L * NUM_PTS * D            # 384  lanes (lvl, pt, d)

# rows of the packed bias / LayerNorm-parameter slab, shape (N_BIAS, LD)
RB1, RB2, RB3 = 0, 1, 2
CB1, CG1, CBT1 = 3, 4, 5
CB2, CG2, CBT2 = 6, 7, 8
CB3 = 9
N_BIAS = 10


# ---------------- shared math ----------------
def _inverse_sigmoid(x):
    x = jnp.clip(x, 0.0, 1.0)
    x1 = jnp.maximum(x, EPS)
    x2 = jnp.maximum(1.0 - x, EPS)
    return jnp.log(x1 / x2)


def _layernorm(x, g, b):
    mu = jnp.mean(x, axis=-1, keepdims=True)
    var = jnp.mean((x - mu) ** 2, axis=-1, keepdims=True)
    return (x - mu) * jax.lax.rsqrt(var + EPS) * g + b


def _blockwise_ln_relu(x, gamma, beta):
    """LayerNorm over each per-level 32-lane block of a (rows, L*D) slab, then ReLU.

    Only place in the kernel that lane-slices the activation (per the review,
    the 16-row LN is the single sanctioned lane slice); everything else keeps
    the (lvl, d) lane structure intact so no row-concats / relayouts are needed.
    """
    outs = []
    for lvl in range(L):
        sl = slice(lvl * D, (lvl + 1) * D)
        outs.append(_layernorm(x[:, sl], gamma[:, sl], beta[:, sl]))
    return jnp.maximum(jnp.concatenate(outs, axis=-1), 0.0)


# ---------------- Pallas kernel: all levels, both branches, 6 MXU dots ----------------
def bev_decoder_kernel(hs_reg_ref, hs_cls_ref, refs_ref, segm_ref,
                       rw1_ref, rw2_ref, rw3_ref, cw1_ref, cw2_ref, cw3_ref, b_ref,
                       cls_out_ref, bbox_out_ref, pts_out_ref):
    # hs_reg_ref : (64, 96)   rows (pt,b,vec), lanes (lvl,d)      -- lane-dense
    # hs_cls_ref : (16, 384)  rows (b,vec),    lanes (lvl,pt,d)   -- lane-dense
    # refs_ref   : (64, 6)    rows (pt,b,vec), lanes (lvl,code)
    # segm_ref   : (16, 3)    last-level segm cls scores [..., :3] (cls_join)
    # rw1/rw2    : (96, 96)   level-block-diagonal reg weights
    # rw3        : (96, 6)    level-block-diagonal reg head (lanes (lvl,code))
    # cw1        : (384, 96)  level-block-diag cls layer1 with pts-mean folded in
    # cw2        : (96, 96)   level-block-diag cls layer2
    # cw3        : (96, 9)    level-block-diag cls head (lanes (lvl,cls))
    # b_ref      : (10, 96)   packed biases / LN gammas & betas
    # outputs    : cls (L,BS,NV,3), bbox (L,BS,NV,4), pts (64, 6)

    b = b_ref[...]                                                  # (10, 96)

    # ---- reg branch: all 3 levels in ONE dot per layer (block-diag weights) ----
    x = hs_reg_ref[...]                                             # (64, 96)
    x = jnp.maximum(jnp.dot(x, rw1_ref[...],
                            preferred_element_type=jnp.float32) + b[RB1:RB1 + 1, :], 0.0)
    x = jnp.maximum(jnp.dot(x, rw2_ref[...],
                            preferred_element_type=jnp.float32) + b[RB2:RB2 + 1, :], 0.0)
    reg = jnp.dot(x, rw3_ref[...],
                  preferred_element_type=jnp.float32) + b[RB3:RB3 + 1, :REG_OUT]  # (64, 6)

    # tmp = sigmoid(reg + inverse_sigmoid(reference))
    pts = jax.nn.sigmoid(reg + _inverse_sigmoid(refs_ref[...]))     # (64, 6)
    pts_out_ref[...] = pts

    # transform_box: rows are (pt, b, vec) so each point block is a tile-aligned
    # 16-row slice -> min/max over points is pure elementwise VPU work.
    p0 = pts[0 * CLS_ROWS:1 * CLS_ROWS]
    p1 = pts[1 * CLS_ROWS:2 * CLS_ROWS]
    p2 = pts[2 * CLS_ROWS:3 * CLS_ROWS]
    p3 = pts[3 * CLS_ROWS:4 * CLS_ROWS]
    mn = jnp.minimum(jnp.minimum(p0, p1), jnp.minimum(p2, p3))      # (16, 6) (lvl, xy)
    mx = jnp.maximum(jnp.maximum(p0, p1), jnp.maximum(p2, p3))
    cxy = (mn + mx) * 0.5
    wh = mx - mn

    # ---- cls branch: pts-per-vec mean folded OFFLINE into cw1; 3 dots total ----
    c = hs_cls_ref[...]                                             # (16, 384)
    c = jnp.dot(c, cw1_ref[...], preferred_element_type=jnp.float32) + b[CB1:CB1 + 1, :]
    c = _blockwise_ln_relu(c, b[CG1:CG1 + 1, :], b[CBT1:CBT1 + 1, :])
    c = jnp.dot(c, cw2_ref[...], preferred_element_type=jnp.float32) + b[CB2:CB2 + 1, :]
    c = _blockwise_ln_relu(c, b[CG2:CG2 + 1, :], b[CBT2:CBT2 + 1, :])
    cls = jnp.dot(c, cw3_ref[...],
                  preferred_element_type=jnp.float32) + b[CB3:CB3 + 1, :CLS_OUT]  # (16, 9)

    segm = segm_ref[...]                                            # (16, 3)

    # tiny per-level epilogue (a few hundred elements; masked stores are ~free)
    for lvl in range(L):                                            # unrolled, L == 3
        bbox_l = jnp.concatenate([cxy[:, lvl * CODE:(lvl + 1) * CODE],
                                  wh[:, lvl * CODE:(lvl + 1) * CODE]], axis=-1)   # (16, 4)
        bbox_out_ref[lvl] = bbox_l.reshape(BS, NUM_VEC, 4)
        cls_l = cls[:, lvl * NUM_CLS:(lvl + 1) * NUM_CLS] + segm                  # cls_join
        cls_out_ref[lvl] = cls_l.reshape(BS, NUM_VEC, NUM_CLS)


def _run_decoder_kernel(hs_reg, hs_cls, refs_packed, segm_join, packed):
    # single invocation, no grid: total footprint << VMEM on all generations,
    # so no tiling / pipelining (review item 10).
    return pl.pallas_call(
        bev_decoder_kernel,
        out_shape=(
            jax.ShapeDtypeStruct((L, BS, NUM_VEC, NUM_CLS), jnp.float32),   # cls
            jax.ShapeDtypeStruct((L, BS, NUM_VEC, 4), jnp.float32),         # bbox (cxcywh)
            jax.ShapeDtypeStruct((REG_ROWS, REG_OUT), jnp.float32),         # pts (pt,b,vec)x(lvl,code)
        ),
    )(hs_reg, hs_cls, refs_packed, segm_join,
      packed["rw1"], packed["rw2"], packed["rw3"],
      packed["cw1"], packed["cw2"], packed["cw3"], packed["biases"])


# ---------------- offline parameter packing (done once at model init) ----------------
def pack_params(params):
    """Pack the 16 branch parameters into level-block-diagonal weight slabs + bias slab."""
    def bdiag(w_stack):                      # (L, Din, Dout) -> (L*Din, L*Dout)
        din, dout = w_stack.shape[1], w_stack.shape[2]
        out = jnp.zeros((L * din, L * dout), jnp.float32)
        for lvl in range(L):
            out = out.at[lvl * din:(lvl + 1) * din,
                         lvl * dout:(lvl + 1) * dout].set(w_stack[lvl])
        return out

    rw1 = bdiag(params["rw1"])               # (96, 96)
    rw2 = bdiag(params["rw2"])               # (96, 96)
    rw3 = bdiag(params["rw3"])               # (96, 6)
    cw2 = bdiag(params["cw2"])               # (96, 96)
    cw3 = bdiag(params["cw3"])               # (96, 9)

    # cls layer 1 with the pts-per-vec mean folded in:
    # input lanes (lvl, pt, d) -> output lanes (lvl, d), weight = cw1[lvl] / NUM_PTS per point.
    cw1 = jnp.zeros((HS_CLS_W, LD), jnp.float32)
    for lvl in range(L):
        for p in range(NUM_PTS):
            r0 = lvl * NUM_PTS * D + p * D
            cw1 = cw1.at[r0:r0 + D, lvl * D:(lvl + 1) * D].set(params["cw1"][lvl] / NUM_PTS)

    def lanes(x):                            # (L, 1, k) -> (1, L*k)   (lvl-major, k-minor)
        return x.reshape(1, -1)

    def lanes_pad(x):
        v = x.reshape(1, -1)
        return jnp.pad(v, ((0, 0), (0, LD - v.shape[1])))

    biases = jnp.concatenate(
        [lanes(params["rb1"]), lanes(params["rb2"]), lanes_pad(params["rb3"]),
         lanes(params["cb1"]), lanes(params["cg1"]), lanes(params["cbeta1"]),
         lanes(params["cb2"]), lanes(params["cg2"]), lanes(params["cbeta2"]),
         lanes_pad(params["cb3"])], axis=0)                                   # (10, 96)

    return {"rw1": rw1, "rw2": rw2, "rw3": rw3,
            "cw1": cw1, "cw2": cw2, "cw3": cw3, "biases": biases}


# ---------------- wrapper: the explicit part of BEVDecoder.forward ----------------
def bev_decoder_head(inter_states, init_reference, inter_references, packed_params,
                     segm_mask_pred_list, segm_cls_scores_list, bev_embed):
    # TODO(synk): self_attn_mask + transformer.IMPNet_part / PositionalQueryGenerator /
    #             GeometricFeatureExtractor / MaskGuidedMapDecoder are external
    #             submodules; their outputs are taken as inputs here.
    # NOTE: references are supplied with CODE(=2) channels (gt_z_flag=False),
    #       so the module's [..., 0:2] select is the identity here.

    # segm stacking + dn / one2one split (dn_pad_size == 0 at inference)
    segm_mask = jnp.stack(segm_mask_pred_list)     # (SEGM_LVL, BS, NV, H, W)
    segm_cls = jnp.stack(segm_cls_scores_list)     # (SEGM_LVL, BS, NV, SEGM_CLS)
    dn = DN_PAD_SIZE
    segm_mask_one2one = segm_mask[:, :, dn:dn + NUM_VEC]
    segm_cls_one2one = segm_cls[:, :, dn:dn + NUM_VEC]

    # ---- lane-dense repacking of the tiny kernel inputs (pure layout plumbing) ----
    # hs: (L, Q, BS, D) native decoder layout; q = vec * NUM_PTS + pt
    hs5 = inter_states.reshape(L, NUM_VEC, NUM_PTS, BS, D)
    hs_reg = jnp.transpose(hs5, (2, 3, 1, 0, 4)).reshape(REG_ROWS, LD)        # (64, 96)
    hs_cls = jnp.transpose(hs5, (3, 1, 0, 2, 4)).reshape(CLS_ROWS, HS_CLS_W)  # (16, 384)

    refs_all = jnp.concatenate([init_reference[None], inter_references[:-1]], axis=0)
    refs_all = refs_all.reshape(L, BS, NUM_VEC, NUM_PTS, CODE)
    refs_packed = jnp.transpose(refs_all, (3, 1, 2, 0, 4)).reshape(REG_ROWS, REG_OUT)

    segm_join = segm_cls_one2one[-1][..., :NUM_CLS].reshape(CLS_ROWS, NUM_CLS)

    cls_one2one, bbox_one2one, pts2 = _run_decoder_kernel(
        hs_reg, hs_cls, refs_packed, segm_join, packed_params)

    # pts: (64, 6) rows (pt,b,vec) x lanes (lvl,code) -> (L, BS, NV, NPTS, CODE)
    pts_one2one = jnp.transpose(
        pts2.reshape(NUM_PTS, BS, NUM_VEC, L, CODE), (3, 1, 2, 0, 4))

    # dn / one2one / one2many slicing over the vec axis is the identity at inference
    # (dn_pad_size == 0, num_vec == num_vec_one2one); cls_join was applied in-kernel.

    # TODO(synk): aux_seg seg_head / pv_seg_head conv heads and bbox_coder.decode
    #             (get_bboxes_whole top-k decoding) are external modules, not reproduced.
    return {
        "bev_embed": bev_embed,
        "all_cls_scores": cls_one2one,
        "all_bbox_preds": bbox_one2one,
        "all_pts_preds": pts_one2one,
        "segm_mask_preds": segm_mask_one2one,
        "segm_cls_scores": segm_cls_one2one,
    }


# ---------------- deterministic parameter init (module-structured) ----------------
def init_params(key):
    def norm(k, shape, scale=0.1):
        return scale * jax.random.normal(k, shape, jnp.float32)
    ks = jax.random.split(key, 9)
    return {
        "cw1": norm(ks[0], (L, D, D)),
        "cb1": jnp.zeros((L, 1, D), jnp.float32),
        "cg1": jnp.ones((L, 1, D), jnp.float32),
        "cbeta1": jnp.zeros((L, 1, D), jnp.float32),
        "cw2": norm(ks[1], (L, D, D)),
        "cb2": jnp.zeros((L, 1, D), jnp.float32),
        "cg2": jnp.ones((L, 1, D), jnp.float32),
        "cbeta2": jnp.zeros((L, 1, D), jnp.float32),
        "cw3": norm(ks[2], (L, D, NUM_CLS)),
        "cb3": jnp.zeros((L, 1, NUM_CLS), jnp.float32),
        "rw1": norm(ks[3], (L, D, D)),
        "rb1": norm(ks[4], (L, 1, D), 0.01),
        "rw2": norm(ks[5], (L, D, D)),
        "rb2": norm(ks[6], (L, 1, D), 0.01),
        "rw3": norm(ks[7], (L, D, CODE)),
        "rb3": norm(ks[8], (L, 1, CODE), 0.01),
    }


# ---------------- pure-JAX reference for the kernel math ----------------
def _ref_head_levels(hs, refs, params):
    P = jax.lax.Precision.HIGHEST
    cls_l, bbox_l, pts_l = [], [], []
    for lvl in range(L):
        h, r = hs[lvl], refs[lvl]
        hm = jnp.mean(h.reshape(BS, NUM_VEC, NUM_PTS, D), axis=2).reshape(BS * NUM_VEC, D)
        x = jnp.dot(hm, params["cw1"][lvl], precision=P) + params["cb1"][lvl]
        x = jnp.maximum(_layernorm(x, params["cg1"][lvl], params["cbeta1"][lvl]), 0.0)
        x = jnp.dot(x, params["cw2"][lvl], precision=P) + params["cb2"][lvl]
        x = jnp.maximum(_layernorm(x, params["cg2"][lvl], params["cbeta2"][lvl]), 0.0)
        cls = jnp.dot(x, params["cw3"][lvl], precision=P) + params["cb3"][lvl]
        cls_l.append(cls.reshape(BS, NUM_VEC, NUM_CLS))
        h2 = h.reshape(BS * Q, D)
        t = jnp.maximum(jnp.dot(h2, params["rw1"][lvl], precision=P) + params["rb1"][lvl], 0.0)
        t = jnp.maximum(jnp.dot(t, params["rw2"][lvl], precision=P) + params["rb2"][lvl], 0.0)
        t = jnp.dot(t, params["rw3"][lvl], precision=P) + params["rb3"][lvl]
        t = t.reshape(BS, Q, CODE) + _inverse_sigmoid(r)
        pts = jax.nn.sigmoid(t)
        pts_l.append(pts)
        pr = pts.reshape(BS, NUM_VEC, NUM_PTS, CODE)
        px, py = pr[..., 0], pr[..., 1]
        xmin, xmax = px.min(2), px.max(2)
        ymin, ymax = py.min(2), py.max(2)
        bbox_l.append(jnp.stack(
            [(xmin + xmax) * 0.5, (ymin + ymax) * 0.5, xmax - xmin, ymax - ymin], -1))
    return jnp.stack(cls_l), jnp.stack(bbox_l), jnp.stack(pts_l)


if __name__ == "__main__":
    key = jax.random.PRNGKey(0)
    k_hs, k_r0, k_ri, k_m, k_c, k_bev, k_par = jax.random.split(key, 7)

    inter_states = jax.random.normal(k_hs, (L, Q, BS, D), jnp.float32)  # native (L,Q,bs,D)
    init_reference = jax.nn.sigmoid(jax.random.normal(k_r0, (BS, Q, CODE)))
    inter_references = jax.nn.sigmoid(jax.random.normal(k_ri, (L, BS, Q, CODE)))
    segm_mask_pred_list = [
        jax.random.normal(jax.random.fold_in(k_m, i), (BS, NUM_VEC, BEV_H, BEV_W))
        for i in range(SEGM_LVL)]
    segm_cls_scores_list = [
        jax.random.normal(jax.random.fold_in(k_c, i), (BS, NUM_VEC, SEGM_CLS))
        for i in range(SEGM_LVL)]
    bev_embed = jax.random.normal(k_bev, (BEV_H * BEV_W, BS, D), jnp.float32)

    params = init_params(k_par)
    packed = pack_params(params)          # one-time offline packing

    head = jax.jit(bev_decoder_head)
    outs = head(inter_states, init_reference, inter_references, packed,
                segm_mask_pred_list, segm_cls_scores_list, bev_embed)
    jax.block_until_ready(outs)

    # numerical check against a pure-JAX reference of the same math
    hs = jnp.transpose(inter_states, (0, 2, 1, 3))
    refs = jnp.concatenate([init_reference[None], inter_references[:-1]], axis=0)
    ref_cls, ref_bbox, ref_pts = _ref_head_levels(hs, refs, params)
    segm_cls = jnp.stack(segm_cls_scores_list)
    ref_cls_join = ref_cls + segm_cls[-1:][..., :3]

    assert jnp.allclose(outs["all_cls_scores"], ref_cls_join, atol=1e-3, rtol=1e-3)
    assert jnp.allclose(outs["all_bbox_preds"], ref_bbox, atol=1e-3, rtol=1e-3)
    assert jnp.allclose(outs["all_pts_preds"],
                        ref_pts.reshape(L, BS, NUM_VEC, NUM_PTS, CODE),
                        atol=1e-3, rtol=1e-3)
    print("KERNEL_OK")
</pallas_src>

<mosaic_0001>
module attributes {stable_mosaic.version = 11 : i64} {
  func.func @bev_decoder_kernel(%arg0: memref<64x96xf32, #tpu.memory_space<vmem>>, %arg1: memref<16x384xf32, #tpu.memory_space<vmem>>, %arg2: memref<64x6xf32, #tpu.memory_space<vmem>>, %arg3: memref<16x3xf32, #tpu.memory_space<vmem>>, %arg4: memref<96x96xf32, #tpu.memory_space<vmem>>, %arg5: memref<96x96xf32, #tpu.memory_space<vmem>>, %arg6: memref<96x6xf32, #tpu.memory_space<vmem>>, %arg7: memref<384x96xf32, #tpu.memory_space<vmem>>, %arg8: memref<96x96xf32, #tpu.memory_space<vmem>>, %arg9: memref<96x9xf32, #tpu.memory_space<vmem>>, %arg10: memref<10x96xf32, #tpu.memory_space<vmem>>, %arg11: memref<3x2x8x3xf32, #tpu.memory_space<vmem>>, %arg12: memref<3x2x8x4xf32, #tpu.memory_space<vmem>>, %arg13: memref<64x6xf32, #tpu.memory_space<vmem>>) attributes {dimension_semantics = [], scalar_prefetch = 0 : i64, scratch_operands = 0 : i64, tpu.core_type = #tpu.core_type<tc>} {
    %c0 = arith.constant 0 : index
    %c0_0 = arith.constant 0 : index
    %0 = vector.load %arg10[%c0, %c0_0] : memref<10x96xf32, #tpu.memory_space<vmem>>, vector<10x96xf32>
    %c0_1 = arith.constant 0 : index
    %c0_2 = arith.constant 0 : index
    %1 = vector.load %arg0[%c0_1, %c0_2] : memref<64x96xf32, #tpu.memory_space<vmem>>, vector<64x96xf32>
    %c0_3 = arith.constant 0 : index
    %c0_4 = arith.constant 0 : index
    %2 = vector.load %arg4[%c0_3, %c0_4] : memref<96x96xf32, #tpu.memory_space<vmem>>, vector<96x96xf32>
    %cst = arith.constant dense<0.000000e+00> : vector<64x96xf32>
    %3 = tpu.matmul %1, %2, %cst {dimension_numbers = #tpu.dot_dimension_numbers<[1], [0], [0], [1], [0, 0, 1, 1], [], []>} : vector<64x96xf32>, vector<96x96xf32>, vector<64x96xf32> -> vector<64x96xf32>
    %4 = vector.extract_strided_slice %0 {offsets = [0, 0], sizes = [1, 96], strides = [1, 1]} : vector<10x96xf32> to vector<1x96xf32>
    %5 = vector.broadcast %4 : vector<1x96xf32> to vector<64x96xf32>
    %6 = arith.addf %3, %5 : vector<64x96xf32>
    %cst_5 = arith.constant 0.000000e+00 : f32
    %7 = vector.broadcast %cst_5 : f32 to vector<64x96xf32>
    %8 = arith.maximumf %6, %7 : vector<64x96xf32>
    %c0_6 = arith.constant 0 : index
    %c0_7 = arith.constant 0 : index
    %9 = vector.load %arg5[%c0_6, %c0_7] : memref<96x96xf32, #tpu.memory_space<vmem>>, vector<96x96xf32>
    %cst_8 = arith.constant dense<0.000000e+00> : vector<64x96xf32>
    %10 = tpu.matmul %8, %9, %cst_8 {dimension_numbers = #tpu.dot_dimension_numbers<[1], [0], [0], [1], [0, 0, 1, 1], [], []>} : vector<64x96xf32>, vector<96x96xf32>, vector<64x96xf32> -> vector<64x96xf32>
    %11 = vector.extract_strided_slice %0 {offsets = [1, 0], sizes = [1, 96], strides = [1, 1]} : vector<10x96xf32> to vector<1x96xf32>
    %12 = vector.broadcast %11 : vector<1x96xf32> to vector<64x96xf32>
    %13 = arith.addf %10, %12 : vector<64x96xf32>
    %cst_9 = arith.constant 0.000000e+00 : f32
    %14 = vector.broadcast %cst_9 : f32 to vector<64x96xf32>
    %15 = arith.maximumf %13, %14 : vector<64x96xf32>
    %c0_10 = arith.constant 0 : index
    %c0_11 = arith.constant 0 : index
    %16 = vector.load %arg6[%c0_10, %c0_11] : memref<96x6xf32, #tpu.memory_space<vmem>>, vector<96x6xf32>
    %cst_12 = arith.constant dense<0.000000e+00> : vector<64x6xf32>
    %17 = tpu.matmul %15, %16, %cst_12 {dimension_numbers = #tpu.dot_dimension_numbers<[1], [0], [0], [1], [0, 0, 1, 1], [], []>} : vector<64x96xf32>, vector<96x6xf32>, vector<64x6xf32> -> vector<64x6xf32>
    %18 = vector.extract_strided_slice %0 {offsets = [2, 0], sizes = [1, 6], strides = [1, 1]} : vector<10x96xf32> to vector<1x6xf32>
    %19 = vector.broadcast %18 : vector<1x6xf32> to vector<64x6xf32>
    %20 = arith.addf %17, %19 : vector<64x6xf32>
    %c0_13 = arith.constant 0 : index
    %c0_14 = arith.constant 0 : index
    %21 = vector.load %arg2[%c0_13, %c0_14] : memref<64x6xf32, #tpu.memory_space<vmem>>, vector<64x6xf32>
    %cst_15 = arith.constant 0.000000e+00 : f32
    %cst_16 = arith.constant 1.000000e+00 : f32
    %22 = vector.broadcast %cst_15 : f32 to vector<64x6xf32>
    %23 = arith.maximumf %22, %21 : vector<64x6xf32>
    %24 = vector.broadcast %cst_16 : f32 to vector<64x6xf32>
    %25 = arith.minimumf %24, %23 : vector<64x6xf32>
    %cst_17 = arith.constant 9.99999974E-6 : f32
    %26 = vector.broadcast %cst_17 : f32 to vector<64x6xf32>
    %27 = arith.maximumf %25, %26 : vector<64x6xf32>
    %cst_18 = arith.constant 1.000000e+00 : f32
    %28 = vector.broadcast %cst_18 : f32 to vector<64x6xf32>
    %29 = arith.subf %28, %25 : vector<64x6xf32>
    %cst_19 = arith.constant 9.99999974E-6 : f32
    %30 = vector.broadcast %cst_19 : f32 to vector<64x6xf32>
    %31 = arith.maximumf %29, %30 : vector<64x6xf32>
    %32 = arith.divf %27, %31 : vector<64x6xf32>
    %33 = math.log %32 : vector<64x6xf32>
    %34 = arith.addf %20, %33 : vector<64x6xf32>
    %35 = arith.negf %34 : vector<64x6xf32>
    %36 = math.exp %35 : vector<64x6xf32>
    %cst_20 = arith.constant 1.000000e+00 : f32
    %37 = vector.broadcast %cst_20 : f32 to vector<64x6xf32>
    %38 = arith.addf %37, %36 : vector<64x6xf32>
    %39 = arith.divf %37, %38 : vector<64x6xf32>
    %c0_21 = arith.constant 0 : index
    %c0_22 = arith.constant 0 : index
    %40 = vector.load %arg13[%c0_21, %c0_22] : memref<64x6xf32, #tpu.memory_space<vmem>>, vector<64x6xf32>
    tpu.vector_store %arg13[%c0_21, %c0_22], %39 {strides = array<i32>} : memref<64x6xf32, #tpu.memory_space<vmem>>, vector<64x6xf32>,
    %41 = vector.extract_strided_slice %39 {offsets = [0, 0], sizes = [16, 6], strides = [1, 1]} : vector<64x6xf32> to vector<16x6xf32>
    %42 = vector.extract_strided_slice %39 {offsets = [16, 0], sizes = [16, 6], strides = [1, 1]} : vector<64x6xf32> to vector<16x6xf32>
    %43 = vector.extract_strided_slice %39 {offsets = [32, 0], sizes = [16, 6], strides = [1, 1]} : vector<64x6xf32> to vector<16x6xf32>
    %44 = vector.extract_strided_slice %39 {offsets = [48, 0], sizes = [16, 6], strides = [1, 1]} : vector<64x6xf32> to vector<16x6xf32>
    %45 = arith.minimumf %41, %42 : vector<16x6xf32>
    %46 = arith.minimumf %43, %44 : vector<16x6xf32>
    %47 = arith.minimumf %45, %46 : vector<16x6xf32>
    %48 = arith.maximumf %41, %42 : vector<16x6xf32>
    %49 = arith.maximumf %43, %44 : vector<16x6xf32>
    %50 = arith.maximumf %48, %49 : vector<16x6xf32>
    %51 = arith.addf %47, %50 : vector<16x6xf32>
    %cst_23 = arith.constant 5.000000e-01 : f32
    %52 = vector.broadcast %cst_23 : f32 to vector<16x6xf32>
    %53 = arith.mulf %51, %52 : vector<16x6xf32>
    %54 = arith.subf %50, %47 : vector<16x6xf32>
    %c0_24 = arith.constant 0 : index
    %c0_25 = arith.constant 0 : index
    %55 = vector.load %arg1[%c0_24, %c0_25] : memref<16x384xf32, #tpu.memory_space<vmem>>, vector<16x384xf32>
    %c0_26 = arith.constant 0 : index
    %c0_27 = arith.constant 0 : index
    %56 = vector.load %arg7[%c0_26, %c0_27] : memref<384x96xf32, #tpu.memory_space<vmem>>, vector<384x96xf32>
    %cst_28 = arith.constant dense<0.000000e+00> : vector<16x96xf32>
    %57 = tpu.matmul %55, %56, %cst_28 {dimension_numbers = #tpu.dot_dimension_numbers<[1], [0], [0], [1], [0, 0, 1, 1], [], []>} : vector<16x384xf32>, vector<384x96xf32>, vector<16x96xf32> -> vector<16x96xf32>
    %58 = vector.extract_strided_slice %0 {offsets = [3, 0], sizes = [1, 96], strides = [1, 1]} : vector<10x96xf32> to vector<1x96xf32>
    %59 = vector.broadcast %58 : vector<1x96xf32> to vector<16x96xf32>
    %60 = arith.addf %57, %59 : vector<16x96xf32>
    %61 = vector.extract_strided_slice %0 {offsets = [4, 0], sizes = [1, 96], strides = [1, 1]} : vector<10x96xf32> to vector<1x96xf32>
    %62 = vector.extract_strided_slice %0 {offsets = [5, 0], sizes = [1, 96], strides = [1, 1]} : vector<10x96xf32> to vector<1x96xf32>
    %63 = vector.extract_strided_slice %60 {offsets = [0, 0], sizes = [16, 32], strides = [1, 1]} : vector<16x96xf32> to vector<16x32xf32>
    %64 = vector.extract_strided_slice %61 {offsets = [0, 0], sizes = [1, 32], strides = [1, 1]} : vector<1x96xf32> to vector<1x32xf32>
    %65 = vector.extract_strided_slice %62 {offsets = [0, 0], sizes = [1, 32], strides = [1, 1]} : vector<1x96xf32> to vector<1x32xf32>
    %cst_29 = arith.constant dense<0.000000e+00> : vector<16xf32>
    %66 = vector.multi_reduction <add>, %63, %cst_29 [1] : vector<16x32xf32> to vector<16xf32>
    %67 = vector.shape_cast %66 : vector<16xf32> to vector<16x1xf32>
    %cst_30 = arith.constant 3.200000e+01 : f32
    %68 = vector.broadcast %cst_30 : f32 to vector<16x1xf32>
    %69 = arith.divf %67, %68 : vector<16x1xf32>
    %70 = vector.broadcast %69 : vector<16x1xf32> to vector<16x32xf32>
    %71 = arith.subf %63, %70 : vector<16x32xf32>
    %72 = arith.mulf %71, %71 : vector<16x32xf32>
    %cst_31 = arith.constant dense<0.000000e+00> : vector<16xf32>
    %73 = vector.multi_reduction <add>, %72, %cst_31 [1] : vector<16x32xf32> to vector<16xf32>
    %74 = vector.shape_cast %73 : vector<16xf32> to vector<16x1xf32>
    %cst_32 = arith.constant 3.200000e+01 : f32
    %75 = vector.broadcast %cst_32 : f32 to vector<16x1xf32>
    %76 = arith.divf %74, %75 : vector<16x1xf32>
    %77 = vector.broadcast %69 : vector<16x1xf32> to vector<16x32xf32>
    %78 = arith.subf %63, %77 : vector<16x32xf32>
    %cst_33 = arith.constant 9.99999974E-6 : f32
    %79 = vector.broadcast %cst_33 : f32 to vector<16x1xf32>
    %80 = arith.addf %76, %79 : vector<16x1xf32>
    %81 = math.rsqrt %80 : vector<16x1xf32>
    %82 = vector.broadcast %81 : vector<16x1xf32> to vector<16x32xf32>
    %83 = arith.mulf %78, %82 : vector<16x32xf32>
    %84 = vector.broadcast %64 : vector<1x32xf32> to vector<16x32xf32>
    %85 = arith.mulf %83, %84 : vector<16x32xf32>
    %86 = vector.broadcast %65 : vector<1x32xf32> to vector<16x32xf32>
    %87 = arith.addf %85, %86 : vector<16x32xf32>
    %88 = vector.extract_strided_slice %60 {offsets = [0, 32], sizes = [16, 32], strides = [1, 1]} : vector<16x96xf32> to vector<16x32xf32>
    %89 = vector.extract_strided_slice %61 {offsets = [0, 32], sizes = [1, 32], strides = [1, 1]} : vector<1x96xf32> to vector<1x32xf32>
    %90 = vector.extract_strided_slice %62 {offsets = [0, 32], sizes = [1, 32], strides = [1, 1]} : vector<1x96xf32> to vector<1x32xf32>
    %cst_34 = arith.constant dense<0.000000e+00> : vector<16xf32>
    %91 = vector.multi_reduction <add>, %88, %cst_34 [1] : vector<16x32xf32> to vector<16xf32>
    %92 = vector.shape_cast %91 : vector<16xf32> to vector<16x1xf32>
    %cst_35 = arith.constant 3.200000e+01 : f32
    %93 = vector.broadcast %cst_35 : f32 to vector<16x1xf32>
    %94 = arith.divf %92, %93 : vector<16x1xf32>
    %95 = vector.broadcast %94 : vector<16x1xf32> to vector<16x32xf32>
    %96 = arith.subf %88, %95 : vector<16x32xf32>
    %97 = arith.mulf %96, %96 : vector<16x32xf32>
    %cst_36 = arith.constant dense<0.000000e+00> : vector<16xf32>
    %98 = vector.multi_reduction <add>, %97, %cst_36 [1] : vector<16x32xf32> to vector<16xf32>
    %99 = vector.shape_cast %98 : vector<16xf32> to vector<16x1xf32>
    %cst_37 = arith.constant 3.200000e+01 : f32
    %100 = vector.broadcast %cst_37 : f32 to vector<16x1xf32>
    %101 = arith.divf %99, %100 : vector<16x1xf32>
    %102 = vector.broadcast %94 : vector<16x1xf32> to vector<16x32xf32>
    %103 = arith.subf %88, %102 : vector<16x32xf32>
    %cst_38 = arith.constant 9.99999974E-6 : f32
    %104 = vector.broadcast %cst_38 : f32 to vector<16x1xf32>
    %105 = arith.addf %101, %104 : vector<16x1xf32>
    %106 = math.rsqrt %105 : vector<16x1xf32>
    %107 = vector.broadcast %106 : vector<16x1xf32> to vector<16x32xf32>
    %108 = arith.mulf %103, %107 : vector<16x32xf32>
    %109 = vector.broadcast %89 : vector<1x32xf32> to vector<16x32xf32>
    %110 = arith.mulf %108, %109 : vector<16x32xf32>
    %111 = vector.broadcast %90 : vector<1x32xf32> to vector<16x32xf32>
    %112 = arith.addf %110, %111 : vector<16x32xf32>
    %113 = vector.extract_strided_slice %60 {offsets = [0, 64], sizes = [16, 32], strides = [1, 1]} : vector<16x96xf32> to vector<16x32xf32>
    %114 = vector.extract_strided_slice %61 {offsets = [0, 64], sizes = [1, 32], strides = [1, 1]} : vector<1x96xf32> to vector<1x32xf32>
    %115 = vector.extract_strided_slice %62 {offsets = [0, 64], sizes = [1, 32], strides = [1, 1]} : vector<1x96xf32> to vector<1x32xf32>
    %cst_39 = arith.constant dense<0.000000e+00> : vector<16xf32>
    %116 = vector.multi_reduction <add>, %113, %cst_39 [1] : vector<16x32xf32> to vector<16xf32>
    %117 = vector.shape_cast %116 : vector<16xf32> to vector<16x1xf32>
    %cst_40 = arith.constant 3.200000e+01 : f32
    %118 = vector.broadcast %cst_40 : f32 to vector<16x1xf32>
    %119 = arith.divf %117, %118 : vector<16x1xf32>
    %120 = vector.broadcast %119 : vector<16x1xf32> to vector<16x32xf32>
    %121 = arith.subf %113, %120 : vector<16x32xf32>
    %122 = arith.mulf %121, %121 : vector<16x32xf32>
    %cst_41 = arith.constant dense<0.000000e+00> : vector<16xf32>
    %123 = vector.multi_reduction <add>, %122, %cst_41 [1] : vector<16x32xf32> to vector<16xf32>
    %124 = vector.shape_cast %123 : vector<16xf32> to vector<16x1xf32>
    %cst_42 = arith.constant 3.200000e+01 : f32
    %125 = vector.broadcast %cst_42 : f32 to vector<16x1xf32>
    %126 = arith.divf %124, %125 : vector<16x1xf32>
    %127 = vector.broadcast %119 : vector<16x1xf32> to vector<16x32xf32>
    %128 = arith.subf %113, %127 : vector<16x32xf32>
    %cst_43 = arith.constant 9.99999974E-6 : f32
    %129 = vector.broadcast %cst_43 : f32 to vector<16x1xf32>
    %130 = arith.addf %126, %129 : vector<16x1xf32>
    %131 = math.rsqrt %130 : vector<16x1xf32>
    %132 = vector.broadcast %131 : vector<16x1xf32> to vector<16x32xf32>
    %133 = arith.mulf %128, %132 : vector<16x32xf32>
    %134 = vector.broadcast %114 : vector<1x32xf32> to vector<16x32xf32>
    %135 = arith.mulf %133, %134 : vector<16x32xf32>
    %136 = vector.broadcast %115 : vector<1x32xf32> to vector<16x32xf32>
    %137 = arith.addf %135, %136 : vector<16x32xf32>
    %138 = tpu.concatenate %87, %112, %137 in 1 : vector<16x32xf32>, vector<16x32xf32>, vector<16x32xf32> -> vector<16x96xf32>
    %cst_44 = arith.constant 0.000000e+00 : f32
    %139 = vector.broadcast %cst_44 : f32 to vector<16x96xf32>
    %140 = arith.maximumf %138, %139 : vector<16x96xf32>
    %c0_45 = arith.constant 0 : index
    %c0_46 = arith.constant 0 : index
    %141 = vector.load %arg8[%c0_45, %c0_46] : memref<96x96xf32, #tpu.memory_space<vmem>>, vector<96x96xf32>
    %cst_47 = arith.constant dense<0.000000e+00> : vector<16x96xf32>
    %142 = tpu.matmul %140, %141, %cst_47 {dimension_numbers = #tpu.dot_dimension_numbers<[1], [0], [0], [1], [0, 0, 1, 1], [], []>} : vector<16x96xf32>, vector<96x96xf32>, vector<16x96xf32> -> vector<16x96xf32>
    %143 = vector.extract_strided_slice %0 {offsets = [6, 0], sizes = [1, 96], strides = [1, 1]} : vector<10x96xf32> to vector<1x96xf32>
    %144 = vector.broadcast %143 : vector<1x96xf32> to vector<16x96xf32>
    %145 = arith.addf %142, %144 : vector<16x96xf32>
    %146 = vector.extract_strided_slice %0 {offsets = [7, 0], sizes = [1, 96], strides = [1, 1]} : vector<10x96xf32> to vector<1x96xf32>
    %147 = vector.extract_strided_slice %0 {offsets = [8, 0], sizes = [1, 96], strides = [1, 1]} : vector<10x96xf32> to vector<1x96xf32>
    %148 = vector.extract_strided_slice %145 {offsets = [0, 0], sizes = [16, 32], strides = [1, 1]} : vector<16x96xf32> to vector<16x32xf32>
    %149 = vector.extract_strided_slice %146 {offsets = [0, 0], sizes = [1, 32], strides = [1, 1]} : vector<1x96xf32> to vector<1x32xf32>
    %150 = vector.extract_strided_slice %147 {offsets = [0, 0], sizes = [1, 32], strides = [1, 1]} : vector<1x96xf32> to vector<1x32xf32>
    %cst_48 = arith.constant dense<0.000000e+00> : vector<16xf32>
    %151 = vector.multi_reduction <add>, %148, %cst_48 [1] : vector<16x32xf32> to vector<16xf32>
    %152 = vector.shape_cast %151 : vector<16xf32> to vector<16x1xf32>
    %cst_49 = arith.constant 3.200000e+01 : f32
    %153 = vector.broadcast %cst_49 : f32 to vector<16x1xf32>
    %154 = arith.divf %152, %153 : vector<16x1xf32>
    %155 = vector.broadcast %154 : vector<16x1xf32> to vector<16x32xf32>
    %156 = arith.subf %148, %155 : vector<16x32xf32>
    %157 = arith.mulf %156, %156 : vector<16x32xf32>
    %cst_50 = arith.constant dense<0.000000e+00> : vector<16xf32>
    %158 = vector.multi_reduction <add>, %157, %cst_50 [1] : vector<16x32xf32> to vector<16xf32>
    %159 = vector.shape_cast %158 : vector<16xf32> to vector<16x1xf32>
    %cst_51 = arith.constant 3.200000e+01 : f32
    %160 = vector.broadcast %cst_51 : f32 to vector<16x1xf32>
    %161 = arith.divf %159, %160 : vector<16x1xf32>
    %162 = vector.broadcast %154 : vector<16x1xf32> to vector<16x32xf32>
    %163 = arith.subf %148, %162 : vector<16x32xf32>
    %cst_52 = arith.constant 9.99999974E-6 : f32
    %164 = vector.broadcast %cst_52 : f32 to vector<16x1xf32>
    %165 = arith.addf %161, %164 : vector<16x1xf32>
    %166 = math.rsqrt %165 : vector<16x1xf32>
    %167 = vector.broadcast %166 : vector<16x1xf32> to vector<16x32xf32>
    %168 = arith.mulf %163, %167 : vector<16x32xf32>
    %169 = vector.broadcast %149 : vector<1x32xf32> to vector<16x32xf32>
    %170 = arith.mulf %168, %169 : vector<16x32xf32>
    %171 = vector.broadcast %150 : vector<1x32xf32> to vector<16x32xf32>
    %172 = arith.addf %170, %171 : vector<16x32xf32>
    %173 = vector.extract_strided_slice %145 {offsets = [0, 32], sizes = [16, 32], strides = [1, 1]} : vector<16x96xf32> to vector<16x32xf32>
    %174 = vector.extract_strided_slice %146 {offsets = [0, 32], sizes = [1, 32], strides = [1, 1]} : vector<1x96xf32> to vector<1x32xf32>
    %175 = vector.extract_strided_slice %147 {offsets = [0, 32], sizes = [1, 32], strides = [1, 1]} : vector<1x96xf32> to vector<1x32xf32>
    %cst_53 = arith.constant dense<0.000000e+00> : vector<16xf32>
    %176 = vector.multi_reduction <add>, %173, %cst_53 [1] : vector<16x32xf32> to vector<16xf32>
    %177 = vector.shape_cast %176 : vector<16xf32> to vector<16x1xf32>
    %cst_54 = arith.constant 3.200000e+01 : f32
    %178 = vector.broadcast %cst_54 : f32 to vector<16x1xf32>
    %179 = arith.divf %177, %178 : vector<16x1xf32>
    %180 = vector.broadcast %179 : vector<16x1xf32> to vector<16x32xf32>
    %181 = arith.subf %173, %180 : vector<16x32xf32>
    %182 = arith.mulf %181, %181 : vector<16x32xf32>
    %cst_55 = arith.constant dense<0.000000e+00> : vector<16xf32>
    %183 = vector.multi_reduction <add>, %182, %cst_55 [1] : vector<16x32xf32> to vector<16xf32>
    %184 = vector.shape_cast %183 : vector<16xf32> to vector<16x1xf32>
    %cst_56 = arith.constant 3.200000e+01 : f32
    %185 = vector.broadcast %cst_56 : f32 to vector<16x1xf32>
    %186 = arith.divf %184, %185 : vector<16x1xf32>
    %187 = vector.broadcast %179 : vector<16x1xf32> to vector<16x32xf32>
    %188 = arith.subf %173, %187 : vector<16x32xf32>
    %cst_57 = arith.constant 9.99999974E-6 : f32
    %189 = vector.broadcast %cst_57 : f32 to vector<16x1xf32>
    %190 = arith.addf %186, %189 : vector<16x1xf32>
    %191 = math.rsqrt %190 : vector<16x1xf32>
    %192 = vector.broadcast %191 : vector<16x1xf32> to vector<16x32xf32>
    %193 = arith.mulf %188, %192 : vector<16x32xf32>
    %194 = vector.broadcast %174 : vector<1x32xf32> to vector<16x32xf32>
    %195 = arith.mulf %193, %194 : vector<16x32xf32>
    %196 = vector.broadcast %175 : vector<1x32xf32> to vector<16x32xf32>
    %197 = arith.addf %195, %196 : vector<16x32xf32>
    %198 = vector.extract_strided_slice %145 {offsets = [0, 64], sizes = [16, 32], strides = [1, 1]} : vector<16x96xf32> to vector<16x32xf32>
    %199 = vector.extract_strided_slice %146 {offsets = [0, 64], sizes = [1, 32], strides = [1, 1]} : vector<1x96xf32> to vector<1x32xf32>
    %200 = vector.extract_strided_slice %147 {offsets = [0, 64], sizes = [1, 32], strides = [1, 1]} : vector<1x96xf32> to vector<1x32xf32>
    %cst_58 = arith.constant dense<0.000000e+00> : vector<16xf32>
    %201 = vector.multi_reduction <add>, %198, %cst_58 [1] : vector<16x32xf32> to vector<16xf32>
    %202 = vector.shape_cast %201 : vector<16xf32> to vector<16x1xf32>
    %cst_59 = arith.constant 3.200000e+01 : f32
    %203 = vector.broadcast %cst_59 : f32 to vector<16x1xf32>
    %204 = arith.divf %202, %203 : vector<16x1xf32>
    %205 = vector.broadcast %204 : vector<16x1xf32> to vector<16x32xf32>
    %206 = arith.subf %198, %205 : vector<16x32xf32>
    %207 = arith.mulf %206, %206 : vector<16x32xf32>
    %cst_60 = arith.constant dense<0.000000e+00> : vector<16xf32>
    %208 = vector.multi_reduction <add>, %207, %cst_60 [1] : vector<16x32xf32> to vector<16xf32>
    %209 = vector.shape_cast %208 : vector<16xf32> to vector<16x1xf32>
    %cst_61 = arith.constant 3.200000e+01 : f32
    %210 = vector.broadcast %cst_61 : f32 to vector<16x1xf32>
    %211 = arith.divf %209, %210 : vector<16x1xf32>
    %212 = vector.broadcast %204 : vector<16x1xf32> to vector<16x32xf32>
    %213 = arith.subf %198, %212 : vector<16x32xf32>
    %cst_62 = arith.constant 9.99999974E-6 : f32
    %214 = vector.broadcast %cst_62 : f32 to vector<16x1xf32>
    %215 = arith.addf %211, %214 : vector<16x1xf32>
    %216 = math.rsqrt %215 : vector<16x1xf32>
    %217 = vector.broadcast %216 : vector<16x1xf32> to vector<16x32xf32>
    %218 = arith.mulf %213, %217 : vector<16x32xf32>
    %219 = vector.broadcast %199 : vector<1x32xf32> to vector<16x32xf32>
    %220 = arith.mulf %218, %219 : vector<16x32xf32>
    %221 = vector.broadcast %200 : vector<1x32xf32> to vector<16x32xf32>
    %222 = arith.addf %220, %221 : vector<16x32xf32>
    %223 = tpu.concatenate %172, %197, %222 in 1 : vector<16x32xf32>, vector<16x32xf32>, vector<16x32xf32> -> vector<16x96xf32>
    %cst_63 = arith.constant 0.000000e+00 : f32
    %224 = vector.broadcast %cst_63 : f32 to vector<16x96xf32>
    %225 = arith.maximumf %223, %224 : vector<16x96xf32>
    %c0_64 = arith.constant 0 : index
    %c0_65 = arith.constant 0 : index
    %226 = vector.load %arg9[%c0_64, %c0_65] : memref<96x9xf32, #tpu.memory_space<vmem>>, vector<96x9xf32>
    %cst_66 = arith.constant dense<0.000000e+00> : vector<16x9xf32>
    %227 = tpu.matmul %225, %226, %cst_66 {dimension_numbers = #tpu.dot_dimension_numbers<[1], [0], [0], [1], [0, 0, 1, 1], [], []>} : vector<16x96xf32>, vector<96x9xf32>, vector<16x9xf32> -> vector<16x9xf32>
    %228 = vector.extract_strided_slice %0 {offsets = [9, 0], sizes = [1, 9], strides = [1, 1]} : vector<10x96xf32> to vector<1x9xf32>
    %229 = vector.broadcast %228 : vector<1x9xf32> to vector<16x9xf32>
    %230 = arith.addf %227, %229 : vector<16x9xf32>
    %c0_67 = arith.constant 0 : index
    %c0_68 = arith.constant 0 : index
    %231 = vector.load %arg3[%c0_67, %c0_68] : memref<16x3xf32, #tpu.memory_space<vmem>>, vector<16x3xf32>
    %232 = vector.extract_strided_slice %53 {offsets = [0, 0], sizes = [16, 2], strides = [1, 1]} : vector<16x6xf32> to vector<16x2xf32>
    %233 = vector.extract_strided_slice %54 {offsets = [0, 0], sizes = [16, 2], strides = [1, 1]} : vector<16x6xf32> to vector<16x2xf32>
    %234 = tpu.concatenate %232, %233 in 1 : vector<16x2xf32>, vector<16x2xf32> -> vector<16x4xf32>
    %235 = vector.shape_cast %234 : vector<16x4xf32> to vector<2x8x4xf32>
    %c0_69 = arith.constant 0 : index
    %c0_70 = arith.constant 0 : index
    %c0_71 = arith.constant 0 : index
    %c0_72 = arith.constant 0 : index
    %236 = vector.load %arg12[%c0_69, %c0_70, %c0_71, %c0_72] : memref<3x2x8x4xf32, #tpu.memory_space<vmem>>, vector<1x2x8x4xf32>
    %237 = vector.shape_cast %236 : vector<1x2x8x4xf32> to vector<2x8x4xf32>
    %238 = vector.shape_cast %235 : vector<2x8x4xf32> to vector<1x2x8x4xf32>
    tpu.vector_store %arg12[%c0_69, %c0_70, %c0_71, %c0_72], %238 {strides = array<i32>} : memref<3x2x8x4xf32, #tpu.memory_space<vmem>>, vector<1x2x8x4xf32>,
    %239 = vector.extract_strided_slice %230 {offsets = [0, 0], sizes = [16, 3], strides = [1, 1]} : vector<16x9xf32> to vector<16x3xf32>
    %240 = arith.addf %239, %231 : vector<16x3xf32>
    %241 = vector.shape_cast %240 : vector<16x3xf32> to vector<2x8x3xf32>
    %c0_73 = arith.constant 0 : index
    %c0_74 = arith.constant 0 : index
    %c0_75 = arith.constant 0 : index
    %c0_76 = arith.constant 0 : index
    %242 = vector.load %arg11[%c0_73, %c0_74, %c0_75, %c0_76] : memref<3x2x8x3xf32, #tpu.memory_space<vmem>>, vector<1x2x8x3xf32>
    %243 = vector.shape_cast %242 : vector<1x2x8x3xf32> to vector<2x8x3xf32>
    %244 = vector.shape_cast %241 : vector<2x8x3xf32> to vector<1x2x8x3xf32>
    tpu.vector_store %arg11[%c0_73, %c0_74, %c0_75, %c0_76], %244 {strides = array<i32>} : memref<3x2x8x3xf32, #tpu.memory_space<vmem>>, vector<1x2x8x3xf32>,
    %245 = vector.extract_strided_slice %53 {offsets = [0, 2], sizes = [16, 2], strides = [1, 1]} : vector<16x6xf32> to vector<16x2xf32>
    %246 = vector.extract_strided_slice %54 {offsets = [0, 2], sizes = [16, 2], strides = [1, 1]} : vector<16x6xf32> to vector<16x2xf32>
    %247 = tpu.concatenate %245, %246 in 1 : vector<16x2xf32>, vector<16x2xf32> -> vector<16x4xf32>
    %248 = vector.shape_cast %247 : vector<16x4xf32> to vector<2x8x4xf32>
    %c1 = arith.constant 1 : index
    %c0_77 = arith.constant 0 : index
    %c0_78 = arith.constant 0 : index
    %c0_79 = arith.constant 0 : index
    %249 = vector.load %arg12[%c1, %c0_77, %c0_78, %c0_79] : memref<3x2x8x4xf32, #tpu.memory_space<vmem>>, vector<1x2x8x4xf32>
    %250 = vector.shape_cast %249 : vector<1x2x8x4xf32> to vector<2x8x4xf32>
    %251 = vector.shape_cast %248 : vector<2x8x4xf32> to vector<1x2x8x4xf32>
    tpu.vector_store %arg12[%c1, %c0_77, %c0_78, %c0_79], %251 {strides = array<i32>} : memref<3x2x8x4xf32, #tpu.memory_space<vmem>>, vector<1x2x8x4xf32>,
    %252 = vector.extract_strided_slice %230 {offsets = [0, 3], sizes = [16, 3], strides = [1, 1]} : vector<16x9xf32> to vector<16x3xf32>
    %253 = arith.addf %252, %231 : vector<16x3xf32>
    %254 = vector.shape_cast %253 : vector<16x3xf32> to vector<2x8x3xf32>
    %c1_80 = arith.constant 1 : index
    %c0_81 = arith.constant 0 : index
    %c0_82 = arith.constant 0 : index
    %c0_83 = arith.constant 0 : index
    %255 = vector.load %arg11[%c1_80, %c0_81, %c0_82, %c0_83] : memref<3x2x8x3xf32, #tpu.memory_space<vmem>>, vector<1x2x8x3xf32>
    %256 = vector.shape_cast %255 : vector<1x2x8x3xf32> to vector<2x8x3xf32>
    %257 = vector.shape_cast %254 : vector<2x8x3xf32> to vector<1x2x8x3xf32>
    tpu.vector_store %arg11[%c1_80, %c0_81, %c0_82, %c0_83], %257 {strides = array<i32>} : memref<3x2x8x3xf32, #tpu.memory_space<vmem>>, vector<1x2x8x3xf32>,
    %258 = vector.extract_strided_slice %53 {offsets = [0, 4], sizes = [16, 2], strides = [1, 1]} : vector<16x6xf32> to vector<16x2xf32>
    %259 = vector.extract_strided_slice %54 {offsets = [0, 4], sizes = [16, 2], strides = [1, 1]} : vector<16x6xf32> to vector<16x2xf32>
    %260 = tpu.concatenate %258, %259 in 1 : vector<16x2xf32>, vector<16x2xf32> -> vector<16x4xf32>
    %261 = vector.shape_cast %260 : vector<16x4xf32> to vector<2x8x4xf32>
    %c2 = arith.constant 2 : index
    %c0_84 = arith.constant 0 : index
    %c0_85 = arith.constant 0 : index
    %c0_86 = arith.constant 0 : index
    %262 = vector.load %arg12[%c2, %c0_84, %c0_85, %c0_86] : memref<3x2x8x4xf32, #tpu.memory_space<vmem>>, vector<1x2x8x4xf32>
    %263 = vector.shape_cast %262 : vector<1x2x8x4xf32> to vector<2x8x4xf32>
    %264 = vector.shape_cast %261 : vector<2x8x4xf32> to vector<1x2x8x4xf32>
    tpu.vector_store %arg12[%c2, %c0_84, %c0_85, %c0_86], %264 {strides = array<i32>} : memref<3x2x8x4xf32, #tpu.memory_space<vmem>>, vector<1x2x8x4xf32>,
    %265 = vector.extract_strided_slice %230 {offsets = [0, 6], sizes = [16, 3], strides = [1, 1]} : vector<16x9xf32> to vector<16x3xf32>
    %266 = arith.addf %265, %231 : vector<16x3xf32>
    %267 = vector.shape_cast %266 : vector<16x3xf32> to vector<2x8x3xf32>
    %c2_87 = arith.constant 2 : index
    %c0_88 = arith.constant 0 : index
    %c0_89 = arith.constant 0 : index
    %c0_90 = arith.constant 0 : index
    %268 = vector.load %arg11[%c2_87, %c0_88, %c0_89, %c0_90] : memref<3x2x8x3xf32, #tpu.memory_space<vmem>>, vector<1x2x8x3xf32>
    %269 = vector.shape_cast %268 : vector<1x2x8x3xf32> to vector<2x8x3xf32>
    %270 = vector.shape_cast %267 : vector<2x8x3xf32> to vector<1x2x8x3xf32>
    tpu.vector_store %arg11[%c2_87, %c0_88, %c0_89, %c0_90], %270 {strides = array<i32>} : memref<3x2x8x3xf32, #tpu.memory_space<vmem>>, vector<1x2x8x3xf32>,
    return
  }
}

</mosaic_0001>

<llo_original>
// kernel: bev_decoder_head.1
$region0: #{bev_decoder_head.1}
  #allocation0 [shape = 'u32[]', space=smem, size = 0x4, offset = 0x4, fixed_abs, tag = 'smem constant byte address 0x4 - core index']
  #allocation1 [shape = 'u32[72,128]{1,0:T(1,128)}', space=vmem, size = 0x9000, scoped, tag = 'internal scratch']
  %s0 = inlined_call_operand.vmem [shape: f32[64,96], index: 0, kind: input, shape index: {}]
  %s1 = inlined_call_operand.vmem [shape: f32[16,384], index: 1, kind: input, shape index: {}]
  %s2 = inlined_call_operand.vmem [shape: f32[64,6], index: 2, kind: input, shape index: {}]
  %s3 = inlined_call_operand.vmem [shape: f32[16,3], index: 3, kind: input, shape index: {}]
  %s4 = inlined_call_operand.vmem [shape: f32[96,96], index: 4, kind: input, shape index: {}]
  %s5 = inlined_call_operand.vmem [shape: f32[96,96], index: 5, kind: input, shape index: {}]
  %s6 = inlined_call_operand.vmem [shape: f32[96,6], index: 6, kind: input, shape index: {}]
  %s7 = inlined_call_operand.vmem [shape: f32[384,96], index: 7, kind: input, shape index: {}]
  %s8 = inlined_call_operand.vmem [shape: f32[96,96], index: 8, kind: input, shape index: {}]
  %s9 = inlined_call_operand.vmem [shape: f32[96,9], index: 9, kind: input, shape index: {}]
  %s10 = inlined_call_operand.vmem [shape: f32[10,96], index: 10, kind: input, shape index: {}]
  %s11 = inlined_call_operand.vmem [shape: f32[3,2,8,3], index: 11, kind: output, shape index: {0}]
  %s12 = inlined_call_operand.vmem [shape: f32[3,2,8,4], index: 12, kind: output, shape index: {1}]
  %s13 = inlined_call_operand.vmem [shape: f32[64,6], index: 13, kind: output, shape index: {2}]
  %14 = xla_tuple %s11, %s12, %s13
  %s15 = sld [smem:[#allocation0]]
  $region70: #{bev_decoder_head.1} parent=0
    _
  %s17 = ssub.s32 1, %s15
  %s18 = scalar_select 0, %s17, %s15
  // Predicated region
  $region2: #{bev_decoder_head.1} parent=0 // pred_check
    _
  $region3: #{bev_decoder_head.1} parent=0 // pred_check_branch
    %20 = sbr.rel (0) target = $region5
  $region4: #{bev_decoder_head.1} parent=0 // pred_region
    _
  $region5: #{bev_decoder_head.1} parent=0 // pred_fallthru
    _
  // Predicated region
  $region6: #{bev_decoder_head.1} parent=0 // pred_check
    _
  $region7: #{bev_decoder_head.1} parent=0 // pred_check_branch
    %22 = sbr.rel (0) target = $region9
  $region8: #{bev_decoder_head.1} parent=0 // pred_region
    _
  $region9: #{bev_decoder_head.1} parent=0 // pred_fallthru
    _
  // Predicated region
  $region10: #{bev_decoder_head.1} parent=0 // pred_check
    _
  $region11: #{bev_decoder_head.1} parent=0 // pred_check_branch
    %24 = sbr.rel (0) target = $region13
  $region12: #{bev_decoder_head.1} parent=0 // pred_region
    _
  $region13: #{bev_decoder_head.1} parent=0 // pred_fallthru
    _
  // Predicated region
  $region14: #{bev_decoder_head.1} parent=0 // pred_check
    _
  $region15: #{bev_decoder_head.1} parent=0 // pred_check_branch
    %26 = sbr.rel (0) target = $region17
  $region16: #{bev_decoder_head.1} parent=0 // pred_region
    _
  $region17: #{bev_decoder_head.1} parent=0 // pred_fallthru
    _
  // Predicated region
  $region18: #{bev_decoder_head.1} parent=0 // pred_check
    _
  $region19: #{bev_decoder_head.1} parent=0 // pred_check_branch
    %28 = sbr.rel (0) target = $region21
  $region20: #{bev_decoder_head.1} parent=0 // pred_region
    _
  $region21: #{bev_decoder_head.1} parent=0 // pred_fallthru
    _
  // Predicated region
  $region22: #{bev_decoder_head.1} parent=0 // pred_check
    _
  $region23: #{bev_decoder_head.1} parent=0 // pred_check_branch
    %30 = sbr.rel (0) target = $region25
  $region24: #{bev_decoder_head.1} parent=0 // pred_region
    _
  $region25: #{bev_decoder_head.1} parent=0 // pred_fallthru
    _
  // Predicated region
  $region26: #{bev_decoder_head.1} parent=0 // pred_check
    _
  $region27: #{bev_decoder_head.1} parent=0 // pred_check_branch
    %32 = sbr.rel (0) target = $region29
  $region28: #{bev_decoder_head.1} parent=0 // pred_region
    _
  $region29: #{bev_decoder_head.1} parent=0 // pred_fallthru
    _
  // Predicated region
  $region30: #{bev_decoder_head.1} parent=0 // pred_check
    _
  $region31: #{bev_decoder_head.1} parent=0 // pred_check_branch
    %34 = sbr.rel (0) target = $region33
  $region32: #{bev_decoder_head.1} parent=0 // pred_region
    _
  $region33: #{bev_decoder_head.1} parent=0 // pred_fallthru
    _
  // Predicated region
  $region34: #{bev_decoder_head.1} parent=0 // pred_check
    _
  $region35: #{bev_decoder_head.1} parent=0 // pred_check_branch
    %36 = sbr.rel (0) target = $region37
  $region36: #{bev_decoder_head.1} parent=0 // pred_region
    _
  $region37: #{bev_decoder_head.1} parent=0 // pred_fallthru
    _
  // Predicated region
  $region38: #{bev_decoder_head.1} parent=0 // pred_check
    _
  $region39: #{bev_decoder_head.1} parent=0 // pred_check_branch
    %38 = sbr.rel (0) target = $region41
  $region40: #{bev_decoder_head.1} parent=0 // pred_region
    _
  $region41: #{bev_decoder_head.1} parent=0 // pred_fallthru
    _
  // Predicated region
  $region42: #{bev_decoder_head.1} parent=0 // pred_check
    _
  $region43: #{bev_decoder_head.1} parent=0 // pred_check_branch
    %40 = sbr.rel (0) target = $region45
  $region44: #{bev_decoder_head.1} parent=0 // pred_region
    _
  $region45: #{bev_decoder_head.1} parent=0 // pred_fallthru
    _
  %v41 = vld [vmem:[%s10] sm:$0xff]
  %v42 = vld [vmem:[%s10 + $0x8] sm:$0x3]
  %v43 = vld [vmem:[%s0] sm:$0xff]
  %v44 = vld [vmem:[%s0 + $0x8] sm:$0xff]
  %v45 = vld [vmem:[%s0 + $0x10] sm:$0xff]
  %v46 = vld [vmem:[%s0 + $0x18] sm:$0xff]
  %v47 = vld [vmem:[%s0 + $0x20] sm:$0xff]
  %v48 = vld [vmem:[%s0 + $0x28] sm:$0xff]
  %v49 = vld [vmem:[%s0 + $0x30] sm:$0xff]
  %v50 = vld [vmem:[%s0 + $0x38] sm:$0xff]
  %v51 = vld [vmem:[%s4] sm:$0xff]
  %v52 = vld [vmem:[%s4 + $0x8] sm:$0xff]
  %v53 = vld [vmem:[%s4 + $0x10] sm:$0xff]
  %v54 = vld [vmem:[%s4 + $0x18] sm:$0xff]
  %v55 = vld [vmem:[%s4 + $0x20] sm:$0xff]
  %v56 = vld [vmem:[%s4 + $0x28] sm:$0xff]
  %v57 = vld [vmem:[%s4 + $0x30] sm:$0xff]
  %v58 = vld [vmem:[%s4 + $0x38] sm:$0xff]
  %v59 = vld [vmem:[%s4 + $0x40] sm:$0xff]
  %v60 = vld [vmem:[%s4 + $0x48] sm:$0xff]
  %v61 = vld [vmem:[%s4 + $0x50] sm:$0xff]
  %v62 = vld [vmem:[%s4 + $0x58] sm:$0xff]
  %v63 = vperm.slane %v41, 0
  %vm64 = vcmask 785408
  %v66 = vsel %vm64, %v43, 0
  %v69 = vsel %vm64, %v44, 0
  %v72 = vsel %vm64, %v45, 0
  %v75 = vsel %vm64, %v46, 0
  %v78 = vsel %vm64, %v47, 0
  %v81 = vsel %vm64, %v48, 0
  %v84 = vsel %vm64, %v49, 0
  %v87 = vsel %vm64, %v50, 0
  %89 = vmatpush.msra.mxu0 0.0
  %90 = vmatpush.msra.mxu0 0.0
  %91 = vmatpush.msra.mxu0 0.0
  %92 = vmatpush.msra.mxu0 0.0
  %93 = vmatpush.msra.mxu0 %v62
  %94 = vmatpush.msra.mxu0 %v61
  %95 = vmatpush.msra.mxu0 %v60
  %96 = vmatpush.msra.mxu0 %v59
  %97 = vmatpush.msra.mxu0 %v58
  %98 = vmatpush.msra.mxu0 %v57
  %99 = vmatpush.msra.mxu0 %v56
  %100 = vmatpush.msra.mxu0 %v55
  %101 = vmatpush.msra.mxu0 %v54
  %102 = vmatpush.msra.mxu0 %v53
  %103 = vmatpush.msra.mxu0 %v52
  %104 = vmatpush.msra.mxu0 %v51
  %105 = vmatmul.f32.gmra.mxu0 %v66
  %v106 = vpop.f32.mrf.mxu0
  %v107 = vadd.f32 %v63, %v106
  %108 = vmatmul.f32.gmra.mxu0 %v69
  %v109 = vpop.f32.mrf.mxu0
  %v110 = vadd.f32 %v63, %v109
  %111 = vmatmul.f32.gmra.mxu0 %v72
  %v112 = vpop.f32.mrf.mxu0
  %v113 = vadd.f32 %v63, %v112
  %114 = vmatmul.f32.gmra.mxu0 %v75
  %v115 = vpop.f32.mrf.mxu0
  %v116 = vadd.f32 %v63, %v115
  %117 = vmatmul.f32.gmra.mxu0 %v78
  %v118 = vpop.f32.mrf.mxu0
  %v119 = vadd.f32 %v63, %v118
  %120 = vmatmul.f32.gmra.mxu0 %v81
  %v121 = vpop.f32.mrf.mxu0
  %v122 = vadd.f32 %v63, %v121
  %123 = vmatmul.f32.gmra.mxu0 %v84
  %v124 = vpop.f32.mrf.mxu0
  %v125 = vadd.f32 %v63, %v124
  %126 = vmatmul.f32.gmra.mxu0 %v87
  %v127 = vpop.f32.mrf.mxu0
  %v128 = vadd.f32 %v63, %v127
  %129 = vdwg.mxu0
  %v130 = vmax.f32 %v107, 0.0
  %v131 = vmax.f32 %v110, 0.0
  %v132 = vmax.f32 %v113, 0.0
  %v133 = vmax.f32 %v116, 0.0
  %v134 = vmax.f32 %v119, 0.0
  %v135 = vmax.f32 %v122, 0.0
  %v136 = vmax.f32 %v125, 0.0
  %v137 = vmax.f32 %v128, 0.0
  %v138 = vld [vmem:[%s5] sm:$0xff]
  %v139 = vld [vmem:[%s5 + $0x8] sm:$0xff]
  %v140 = vld [vmem:[%s5 + $0x10] sm:$0xff]
  %v141 = vld [vmem:[%s5 + $0x18] sm:$0xff]
  %v142 = vld [vmem:[%s5 + $0x20] sm:$0xff]
  %v143 = vld [vmem:[%s5 + $0x28] sm:$0xff]
  %v144 = vld [vmem:[%s5 + $0x30] sm:$0xff]
  %v145 = vld [vmem:[%s5 + $0x38] sm:$0xff]
  %v146 = vld [vmem:[%s5 + $0x40] sm:$0xff]
  %v147 = vld [vmem:[%s5 + $0x48] sm:$0xff]
  %v148 = vld [vmem:[%s5 + $0x50] sm:$0xff]
  %v149 = vld [vmem:[%s5 + $0x58] sm:$0xff]
  %v150 = vperm.slane %v41, 1
  %v152 = vsel %vm64, %v130, 0
  %v155 = vsel %vm64, %v131, 0
  %v158 = vsel %vm64, %v132, 0
  %v161 = vsel %vm64, %v133, 0
  %v164 = vsel %vm64, %v134, 0
  %v167 = vsel %vm64, %v135, 0
  %v170 = vsel %vm64, %v136, 0
  %v173 = vsel %vm64, %v137, 0
  %175 = vmatpush.msra.mxu0 0.0
  %176 = vmatpush.msra.mxu0 0.0
  %177 = vmatpush.msra.mxu0 0.0
  %178 = vmatpush.msra.mxu0 0.0
  %179 = vmatpush.msra.mxu0 %v149
  %180 = vmatpush.msra.mxu0 %v148
  %181 = vmatpush.msra.mxu0 %v147
  %182 = vmatpush.msra.mxu0 %v146
  %183 = vmatpush.msra.mxu0 %v145
  %184 = vmatpush.msra.mxu0 %v144
  %185 = vmatpush.msra.mxu0 %v143
  %186 = vmatpush.msra.mxu0 %v142
  %187 = vmatpush.msra.mxu0 %v141
  %188 = vmatpush.msra.mxu0 %v140
  %189 = vmatpush.msra.mxu0 %v139
  %190 = vmatpush.msra.mxu0 %v138
  %191 = vmatmul.f32.gmra.mxu0 %v152
  %v192 = vpop.f32.mrf.mxu0
  %v193 = vadd.f32 %v150, %v192
  %194 = vmatmul.f32.gmra.mxu0 %v155
  %v195 = vpop.f32.mrf.mxu0
  %v196 = vadd.f32 %v150, %v195
  %197 = vmatmul.f32.gmra.mxu0 %v158
  %v198 = vpop.f32.mrf.mxu0
  %v199 = vadd.f32 %v150, %v198
  %200 = vmatmul.f32.gmra.mxu0 %v161
  %v201 = vpop.f32.mrf.mxu0
  %v202 = vadd.f32 %v150, %v201
  %203 = vmatmul.f32.gmra.mxu0 %v164
  %v204 = vpop.f32.mrf.mxu0
  %v205 = vadd.f32 %v150, %v204
  %206 = vmatmul.f32.gmra.mxu0 %v167
  %v207 = vpop.f32.mrf.mxu0
  %v208 = vadd.f32 %v150, %v207
  %209 = vmatmul.f32.gmra.mxu0 %v170
  %v210 = vpop.f32.mrf.mxu0
  %v211 = vadd.f32 %v150, %v210
  %212 = vmatmul.f32.gmra.mxu0 %v173
  %v213 = vpop.f32.mrf.mxu0
  %v214 = vadd.f32 %v150, %v213
  %215 = vdwg.mxu0
  %v216 = vmax.f32 %v193, 0.0
  %v217 = vmax.f32 %v196, 0.0
  %v218 = vmax.f32 %v199, 0.0
  %v219 = vmax.f32 %v202, 0.0
  %v220 = vmax.f32 %v205, 0.0
  %v221 = vmax.f32 %v208, 0.0
  %v222 = vmax.f32 %v211, 0.0
  %v223 = vmax.f32 %v214, 0.0
  %v224 = vld [vmem:[%s6] sm:$0xff]
  %v225 = vld [vmem:[%s6 + $0x8] sm:$0xff]
  %v226 = vld [vmem:[%s6 + $0x10] sm:$0xff]
  %v227 = vld [vmem:[%s6 + $0x18] sm:$0xff]
  %v228 = vld [vmem:[%s6 + $0x20] sm:$0xff]
  %v229 = vld [vmem:[%s6 + $0x28] sm:$0xff]
  %v230 = vld [vmem:[%s6 + $0x30] sm:$0xff]
  %v231 = vld [vmem:[%s6 + $0x38] sm:$0xff]
  %v232 = vld [vmem:[%s6 + $0x40] sm:$0xff]
  %v233 = vld [vmem:[%s6 + $0x48] sm:$0xff]
  %v234 = vld [vmem:[%s6 + $0x50] sm:$0xff]
  %v235 = vld [vmem:[%s6 + $0x58] sm:$0xff]
  %v236 = vperm.slane %v41, 2
  %v238 = vsel %vm64, %v216, 0
  %v241 = vsel %vm64, %v217, 0
  %v244 = vsel %vm64, %v218, 0
  %v247 = vsel %vm64, %v219, 0
  %v250 = vsel %vm64, %v220, 0
  %v253 = vsel %vm64, %v221, 0
  %v256 = vsel %vm64, %v222, 0
  %v259 = vsel %vm64, %v223, 0
  %261 = vmatpush.msra.mxu0 0.0
  %262 = vmatpush.msra.mxu0 0.0
  %263 = vmatpush.msra.mxu0 0.0
  %264 = vmatpush.msra.mxu0 0.0
  %265 = vmatpush.msra.mxu0 %v235
  %266 = vmatpush.msra.mxu0 %v234
  %267 = vmatpush.msra.mxu0 %v233
  %268 = vmatpush.msra.mxu0 %v232
  %269 = vmatpush.msra.mxu0 %v231
  %270 = vmatpush.msra.mxu0 %v230
  %271 = vmatpush.msra.mxu0 %v229
  %272 = vmatpush.msra.mxu0 %v228
  %273 = vmatpush.msra.mxu0 %v227
  %274 = vmatpush.msra.mxu0 %v226
  %275 = vmatpush.msra.mxu0 %v225
  %276 = vmatpush.msra.mxu0 %v224
  %277 = vmatmul.f32.gmra.mxu0 %v238
  %v278 = vpop.f32.mrf.mxu0
  %v279 = vadd.f32 %v236, %v278
  %280 = vmatmul.f32.gmra.mxu0 %v241
  %v281 = vpop.f32.mrf.mxu0
  %v282 = vadd.f32 %v236, %v281
  %283 = vmatmul.f32.gmra.mxu0 %v244
  %v284 = vpop.f32.mrf.mxu0
  %v285 = vadd.f32 %v236, %v284
  %286 = vmatmul.f32.gmra.mxu0 %v247
  %v287 = vpop.f32.mrf.mxu0
  %v288 = vadd.f32 %v236, %v287
  %289 = vmatmul.f32.gmra.mxu0 %v250
  %v290 = vpop.f32.mrf.mxu0
  %v291 = vadd.f32 %v236, %v290
  %292 = vmatmul.f32.gmra.mxu0 %v253
  %v293 = vpop.f32.mrf.mxu0
  %v294 = vadd.f32 %v236, %v293
  %295 = vmatmul.f32.gmra.mxu0 %v256
  %v296 = vpop.f32.mrf.mxu0
  %v297 = vadd.f32 %v236, %v296
  %298 = vmatmul.f32.gmra.mxu0 %v259
  %v299 = vpop.f32.mrf.mxu0
  %v300 = vadd.f32 %v236, %v299
  %301 = vdwg.mxu0
  %v302 = vld [vmem:[%s2] sm:$0xff]
  %v303 = vld [vmem:[%s2 + $0x8] sm:$0xff]
  %v304 = vld [vmem:[%s2 + $0x10] sm:$0xff]
  %v305 = vld [vmem:[%s2 + $0x18] sm:$0xff]
  %v306 = vld [vmem:[%s2 + $0x20] sm:$0xff]
  %v307 = vld [vmem:[%s2 + $0x28] sm:$0xff]
  %v308 = vld [vmem:[%s2 + $0x30] sm:$0xff]
  %v309 = vld [vmem:[%s2 + $0x38] sm:$0xff]
  %v310 = vmax.f32 %v302, 0.0
  %v311 = vmax.f32 %v303, 0.0
  %v312 = vmax.f32 %v304, 0.0
  %v313 = vmax.f32 %v305, 0.0
  %v314 = vmax.f32 %v306, 0.0
  %v315 = vmax.f32 %v307, 0.0
  %v316 = vmax.f32 %v308, 0.0
  %v317 = vmax.f32 %v309, 0.0
  %v318 = vmin.f32 %v310, 1.0
  %v319 = vmin.f32 %v311, 1.0
  %v320 = vmin.f32 %v312, 1.0
  %v321 = vmin.f32 %v313, 1.0
  %v322 = vmin.f32 %v314, 1.0
  %v323 = vmin.f32 %v315, 1.0
  %v324 = vmin.f32 %v316, 1.0
  %v325 = vmin.f32 %v317, 1.0
  %v326 = vmax.f32 %v318, 1e-05
  %v327 = vmax.f32 %v319, 1e-05
  %v328 = vmax.f32 %v320, 1e-05
  %v329 = vmax.f32 %v321, 1e-05
  %v330 = vmax.f32 %v322, 1e-05
  %v331 = vmax.f32 %v323, 1e-05
  %v332 = vmax.f32 %v324, 1e-05
  %v333 = vmax.f32 %v325, 1e-05
  %v334 = vsub.f32 1.0, %v318
  %v335 = vsub.f32 1.0, %v319
  %v336 = vsub.f32 1.0, %v320
  %v337 = vsub.f32 1.0, %v321
  %v338 = vsub.f32 1.0, %v322
  %v339 = vsub.f32 1.0, %v323
  %v340 = vsub.f32 1.0, %v324
  %v341 = vsub.f32 1.0, %v325
  %v342 = vmax.f32 %v334, 1e-05
  %v343 = vmax.f32 %v335, 1e-05
  %v344 = vmax.f32 %v336, 1e-05
  %v345 = vmax.f32 %v337, 1e-05
  %v346 = vmax.f32 %v338, 1e-05
  %v347 = vmax.f32 %v339, 1e-05
  %v348 = vmax.f32 %v340, 1e-05
  %v349 = vmax.f32 %v341, 1e-05
  %v350 = vrcp.pop %v342
  %v351 = vmul.f32 %v342, %v350
  %v352 = vsub.f32 1.0, %v351
  %v353 = vmul.f32 %v350, %v352
  %v354 = vadd.f32 %v350, %v353
  %vm355 = vweird.f32 %v342
  %vm356 = vweird.f32 %v350
  %vm357 = vmor %vm355, %vm356
  %v358 = vsel %vm357, %v350, %v354
  %v359 = vand.u32 2147483647, %v342
  %vm360 = vcmp.eq.f32.partialorder %v359, 8.507059e+37
  %v361 = vand.u32 %v342, 2147483648
  %v362 = vor.u32 1.1754944e-38, %v361
  %v363 = vsel %vm360, %v362, %v358
  %v364 = vmul.f32 %v326, %v363
  %v365 = vrcp.pop %v343
  %v366 = vmul.f32 %v343, %v365
  %v367 = vsub.f32 1.0, %v366
  %v368 = vmul.f32 %v365, %v367
  %v369 = vadd.f32 %v365, %v368
  %vm370 = vweird.f32 %v343
  %vm371 = vweird.f32 %v365
  %vm372 = vmor %vm370, %vm371
  %v373 = vsel %vm372, %v365, %v369
  %v374 = vand.u32 2147483647, %v343
  %vm375 = vcmp.eq.f32.partialorder %v374, 8.507059e+37
  %v376 = vand.u32 %v343, 2147483648
  %v377 = vor.u32 1.1754944e-38, %v376
  %v378 = vsel %vm375, %v377, %v373
  %v379 = vmul.f32 %v327, %v378
  %v380 = vrcp.pop %v344
  %v381 = vmul.f32 %v344, %v380
  %v382 = vsub.f32 1.0, %v381
  %v383 = vmul.f32 %v380, %v382
  %v384 = vadd.f32 %v380, %v383
  %vm385 = vweird.f32 %v344
  %vm386 = vweird.f32 %v380
  %vm387 = vmor %vm385, %vm386
  %v388 = vsel %vm387, %v380, %v384
  %v389 = vand.u32 2147483647, %v344
  %vm390 = vcmp.eq.f32.partialorder %v389, 8.507059e+37
  %v391 = vand.u32 %v344, 2147483648
  %v392 = vor.u32 1.1754944e-38, %v391
  %v393 = vsel %vm390, %v392, %v388
  %v394 = vmul.f32 %v328, %v393
  %v395 = vrcp.pop %v345
  %v396 = vmul.f32 %v345, %v395
  %v397 = vsub.f32 1.0, %v396
  %v398 = vmul.f32 %v395, %v397
  %v399 = vadd.f32 %v395, %v398
  %vm400 = vweird.f32 %v345
  %vm401 = vweird.f32 %v395
  %vm402 = vmor %vm400, %vm401
  %v403 = vsel %vm402, %v395, %v399
  %v404 = vand.u32 2147483647, %v345
  %vm405 = vcmp.eq.f32.partialorder %v404, 8.507059e+37
  %v406 = vand.u32 %v345, 2147483648
  %v407 = vor.u32 1.1754944e-38, %v406
  %v408 = vsel %vm405, %v407, %v403
  %v409 = vmul.f32 %v329, %v408
  %v410 = vrcp.pop %v346
  %v411 = vmul.f32 %v346, %v410
  %v412 = vsub.f32 1.0, %v411
  %v413 = vmul.f32 %v410, %v412
  %v414 = vadd.f32 %v410, %v413
  %vm415 = vweird.f32 %v346
  %vm416 = vweird.f32 %v410
  %vm417 = vmor %vm415, %vm416
  %v418 = vsel %vm417, %v410, %v414
  %v419 = vand.u32 2147483647, %v346
  %vm420 = vcmp.eq.f32.partialorder %v419, 8.507059e+37
  %v421 = vand.u32 %v346, 2147483648
  %v422 = vor.u32 1.1754944e-38, %v421
  %v423 = vsel %vm420, %v422, %v418
  %v424 = vmul.f32 %v330, %v423
  %v425 = vrcp.pop %v347
  %v426 = vmul.f32 %v347, %v425
  %v427 = vsub.f32 1.0, %v426
  %v428 = vmul.f32 %v425, %v427
  %v429 = vadd.f32 %v425, %v428
  %vm430 = vweird.f32 %v347
  %vm431 = vweird.f32 %v425
  %vm432 = vmor %vm430, %vm431
  %v433 = vsel %vm432, %v425, %v429
  %v434 = vand.u32 2147483647, %v347
  %vm435 = vcmp.eq.f32.partialorder %v434, 8.507059e+37
  %v436 = vand.u32 %v347, 2147483648
  %v437 = vor.u32 1.1754944e-38, %v436
  %v438 = vsel %vm435, %v437, %v433
  %v439 = vmul.f32 %v331, %v438
  %v440 = vrcp.pop %v348
  %v441 = vmul.f32 %v348, %v440
  %v442 = vsub.f32 1.0, %v441
  %v443 = vmul.f32 %v440, %v442
  %v444 = vadd.f32 %v440, %v443
  %vm445 = vweird.f32 %v348
  %vm446 = vweird.f32 %v440
  %vm447 = vmor %vm445, %vm446
  %v448 = vsel %vm447, %v440, %v444
  %v449 = vand.u32 2147483647, %v348
  %vm450 = vcmp.eq.f32.partialorder %v449, 8.507059e+37
  %v451 = vand.u32 %v348, 2147483648
  %v452 = vor.u32 1.1754944e-38, %v451
  %v453 = vsel %vm450, %v452, %v448
  %v454 = vmul.f32 %v332, %v453
  %v455 = vrcp.pop %v349
  %v456 = vmul.f32 %v349, %v455
  %v457 = vsub.f32 1.0, %v456
  %v458 = vmul.f32 %v455, %v457
  %v459 = vadd.f32 %v455, %v458
  %vm460 = vweird.f32 %v349
  %vm461 = vweird.f32 %v455
  %vm462 = vmor %vm460, %vm461
  %v463 = vsel %vm462, %v455, %v459
  %v464 = vand.u32 2147483647, %v349
  %vm465 = vcmp.eq.f32.partialorder %v464, 8.507059e+37
  %v466 = vand.u32 %v349, 2147483648
  %v467 = vor.u32 1.1754944e-38, %v466
  %v468 = vsel %vm465, %v467, %v463
  %v469 = vmul.f32 %v333, %v468
  %v470 = vlog2.pop %v364
  %v471 = vmul.f32 %v470, 0.6931472
  %v472 = vlog2.pop %v379
  %v473 = vmul.f32 %v472, 0.6931472
  %v474 = vlog2.pop %v394
  %v475 = vmul.f32 %v474, 0.6931472
  %v476 = vlog2.pop %v409
  %v477 = vmul.f32 %v476, 0.6931472
  %v478 = vlog2.pop %v424
  %v479 = vmul.f32 %v478, 0.6931472
  %v480 = vlog2.pop %v439
  %v481 = vmul.f32 %v480, 0.6931472
  %v482 = vlog2.pop %v454
  %v483 = vmul.f32 %v482, 0.6931472
  %v484 = vlog2.pop %v469
  %v485 = vmul.f32 %v484, 0.6931472
  %v486 = vadd.f32 %v279, %v471
  %v487 = vadd.f32 %v282, %v473
  %v488 = vadd.f32 %v285, %v475
  %v489 = vadd.f32 %v288, %v477
  %v490 = vadd.f32 %v291, %v479
  %v491 = vadd.f32 %v294, %v481
  %v492 = vadd.f32 %v297, %v483
  %v493 = vadd.f32 %v300, %v485
  %v494 = vxor.u32 %v486, 2147483648
  %v495 = vxor.u32 %v487, 2147483648
  %v496 = vxor.u32 %v488, 2147483648
  %v497 = vxor.u32 %v489, 2147483648
  %v498 = vxor.u32 %v490, 2147483648
  %v499 = vxor.u32 %v491, 2147483648
  %v500 = vxor.u32 %v492, 2147483648
  %v501 = vxor.u32 %v493, 2147483648
  %v502 = vmul.f32 %v494, 1.442695
  %v503 = vpow.pop %v502
  %v504 = vmul.f32 %v495, 1.442695
  %v505 = vpow.pop %v504
  %v506 = vmul.f32 %v496, 1.442695
  %v507 = vpow.pop %v506
  %v508 = vmul.f32 %v497, 1.442695
  %v509 = vpow.pop %v508
  %v510 = vmul.f32 %v498, 1.442695
  %v511 = vpow.pop %v510
  %v512 = vmul.f32 %v499, 1.442695
  %v513 = vpow.pop %v512
  %v514 = vmul.f32 %v500, 1.442695
  %v515 = vpow.pop %v514
  %v516 = vmul.f32 %v501, 1.442695
  %v517 = vpow.pop %v516
  %v518 = vadd.f32 %v503, 1.0
  %v519 = vadd.f32 %v505, 1.0
  %v520 = vadd.f32 %v507, 1.0
  %v521 = vadd.f32 %v509, 1.0
  %v522 = vadd.f32 %v511, 1.0
  %v523 = vadd.f32 %v513, 1.0
  %v524 = vadd.f32 %v515, 1.0
  %v525 = vadd.f32 %v517, 1.0
  %v526 = vrcp.pop %v518
  %v527 = vmul.f32 %v518, %v526
  %v528 = vsub.f32 1.0, %v527
  %v529 = vmul.f32 %v526, %v528
  %v530 = vadd.f32 %v526, %v529
  %vm531 = vweird.f32 %v518
  %vm532 = vweird.f32 %v526
  %vm533 = vmor %vm531, %vm532
  %v534 = vsel %vm533, %v526, %v530
  %v535 = vand.u32 2147483647, %v518
  %vm536 = vcmp.eq.f32.partialorder %v535, 8.507059e+37
  %v537 = vand.u32 %v518, 2147483648
  %v538 = vor.u32 1.1754944e-38, %v537
  %v539 = vsel %vm536, %v538, %v534
  %v540 = vmul.f32 1.0, %v539
  %v541 = vrcp.pop %v519
  %v542 = vmul.f32 %v519, %v541
  %v543 = vsub.f32 1.0, %v542
  %v544 = vmul.f32 %v541, %v543
  %v545 = vadd.f32 %v541, %v544
  %vm546 = vweird.f32 %v519
  %vm547 = vweird.f32 %v541
  %vm548 = vmor %vm546, %vm547
  %v549 = vsel %vm548, %v541, %v545
  %v550 = vand.u32 2147483647, %v519
  %vm551 = vcmp.eq.f32.partialorder %v550, 8.507059e+37
  %v552 = vand.u32 %v519, 2147483648
  %v553 = vor.u32 1.1754944e-38, %v552
  %v554 = vsel %vm551, %v553, %v549
  %v555 = vmul.f32 1.0, %v554
  %v556 = vrcp.pop %v520
  %v557 = vmul.f32 %v520, %v556
  %v558 = vsub.f32 1.0, %v557
  %v559 = vmul.f32 %v556, %v558
  %v560 = vadd.f32 %v556, %v559
  %vm561 = vweird.f32 %v520
  %vm562 = vweird.f32 %v556
  %vm563 = vmor %vm561, %vm562
  %v564 = vsel %vm563, %v556, %v560
  %v565 = vand.u32 2147483647, %v520
  %vm566 = vcmp.eq.f32.partialorder %v565, 8.507059e+37
  %v567 = vand.u32 %v520, 2147483648
  %v568 = vor.u32 1.1754944e-38, %v567
  %v569 = vsel %vm566, %v568, %v564
  %v570 = vmul.f32 1.0, %v569
  %v571 = vrcp.pop %v521
  %v572 = vmul.f32 %v521, %v571
  %v573 = vsub.f32 1.0, %v572
  %v574 = vmul.f32 %v571, %v573
  %v575 = vadd.f32 %v571, %v574
  %vm576 = vweird.f32 %v521
  %vm577 = vweird.f32 %v571
  %vm578 = vmor %vm576, %vm577
  %v579 = vsel %vm578, %v571, %v575
  %v580 = vand.u32 2147483647, %v521
  %vm581 = vcmp.eq.f32.partialorder %v580, 8.507059e+37
  %v582 = vand.u32 %v521, 2147483648
  %v583 = vor.u32 1.1754944e-38, %v582
  %v584 = vsel %vm581, %v583, %v579
  %v585 = vmul.f32 1.0, %v584
  %v586 = vrcp.pop %v522
  %v587 = vmul.f32 %v522, %v586
  %v588 = vsub.f32 1.0, %v587
  %v589 = vmul.f32 %v586, %v588
  %v590 = vadd.f32 %v586, %v589
  %vm591 = vweird.f32 %v522
  %vm592 = vweird.f32 %v586
  %vm593 = vmor %vm591, %vm592
  %v594 = vsel %vm593, %v586, %v590
  %v595 = vand.u32 2147483647, %v522
  %vm596 = vcmp.eq.f32.partialorder %v595, 8.507059e+37
  %v597 = vand.u32 %v522, 2147483648
  %v598 = vor.u32 1.1754944e-38, %v597
  %v599 = vsel %vm596, %v598, %v594
  %v600 = vmul.f32 1.0, %v599
  %v601 = vrcp.pop %v523
  %v602 = vmul.f32 %v523, %v601
  %v603 = vsub.f32 1.0, %v602
  %v604 = vmul.f32 %v601, %v603
  %v605 = vadd.f32 %v601, %v604
  %vm606 = vweird.f32 %v523
  %vm607 = vweird.f32 %v601
  %vm608 = vmor %vm606, %vm607
  %v609 = vsel %vm608, %v601, %v605
  %v610 = vand.u32 2147483647, %v523
  %vm611 = vcmp.eq.f32.partialorder %v610, 8.507059e+37
  %v612 = vand.u32 %v523, 2147483648
  %v613 = vor.u32 1.1754944e-38, %v612
  %v614 = vsel %vm611, %v613, %v609
  %v615 = vmul.f32 1.0, %v614
  %v616 = vrcp.pop %v524
  %v617 = vmul.f32 %v524, %v616
  %v618 = vsub.f32 1.0, %v617
  %v619 = vmul.f32 %v616, %v618
  %v620 = vadd.f32 %v616, %v619
  %vm621 = vweird.f32 %v524
  %vm622 = vweird.f32 %v616
  %vm623 = vmor %vm621, %vm622
  %v624 = vsel %vm623, %v616, %v620
  %v625 = vand.u32 2147483647, %v524
  %vm626 = vcmp.eq.f32.partialorder %v625, 8.507059e+37
  %v627 = vand.u32 %v524, 2147483648
  %v628 = vor.u32 1.1754944e-38, %v627
  %v629 = vsel %vm626, %v628, %v624
  %v630 = vmul.f32 1.0, %v629
  %v631 = vrcp.pop %v525
  %v632 = vmul.f32 %v525, %v631
  %v633 = vsub.f32 1.0, %v632
  %v634 = vmul.f32 %v631, %v633
  %v635 = vadd.f32 %v631, %v634
  %vm636 = vweird.f32 %v525
  %vm637 = vweird.f32 %v631
  %vm638 = vmor %vm636, %vm637
  %v639 = vsel %vm638, %v631, %v635
  %v640 = vand.u32 2147483647, %v525
  %vm641 = vcmp.eq.f32.partialorder %v640, 8.507059e+37
  %v642 = vand.u32 %v525, 2147483648
  %v643 = vor.u32 1.1754944e-38, %v642
  %v644 = vsel %vm641, %v643, %v639
  %v645 = vmul.f32 1.0, %v644
  %vm646 = vcmask 48128
  %647 = vst.msk [vmem:[%s13] sm:$0xff] %vm646, %v540
  %648 = vst.msk [vmem:[%s13 + $0x8] sm:$0xff] %vm646, %v555
  %649 = vst.msk [vmem:[%s13 + $0x10] sm:$0xff] %vm646, %v570
  %650 = vst.msk [vmem:[%s13 + $0x18] sm:$0xff] %vm646, %v585
  %651 = vst.msk [vmem:[%s13 + $0x20] sm:$0xff] %vm646, %v600
  %652 = vst.msk [vmem:[%s13 + $0x28] sm:$0xff] %vm646, %v615
  %653 = vst.msk [vmem:[%s13 + $0x30] sm:$0xff] %vm646, %v630
  %654 = vst.msk [vmem:[%s13 + $0x38] sm:$0xff] %vm646, %v645
  %v655 = vmin.f32 %v540, %v570
  %v656 = vmin.f32 %v555, %v585
  %v657 = vmin.f32 %v600, %v630
  %v658 = vmin.f32 %v615, %v645
  %v659 = vmin.f32 %v655, %v657
  %v660 = vmin.f32 %v656, %v658
  %v661 = vmax.f32 %v540, %v570
  %v662 = vmax.f32 %v555, %v585
  %v663 = vmax.f32 %v600, %v630
  %v664 = vmax.f32 %v615, %v645
  %v665 = vmax.f32 %v661, %v663
  %v666 = vmax.f32 %v662, %v664
  %v667 = vadd.f32 %v659, %v665
  %v668 = vadd.f32 %v660, %v666
  %v669 = vmul.f32 %v667, 0.5
  %v670 = vmul.f32 %v668, 0.5
  %v671 = vsub.f32 %v665, %v659
  %v672 = vsub.f32 %v666, %v660
  %v673 = vld [vmem:[%s1] sm:$0xff]
  %v674 = vld [vmem:[%s1 + $0x8] sm:$0xff]
  %v675 = vld [vmem:[%s1 + $0x10] sm:$0xff]
  %v676 = vld [vmem:[%s1 + $0x18] sm:$0xff]
  %v677 = vld [vmem:[%s1 + $0x20] sm:$0xff]
  %v678 = vld [vmem:[%s1 + $0x28] sm:$0xff]
  %v679 = vld [vmem:[%s7] sm:$0xff]
  %v680 = vld [vmem:[%s7 + $0x8] sm:$0xff]
  %v681 = vld [vmem:[%s7 + $0x10] sm:$0xff]
  %v682 = vld [vmem:[%s7 + $0x18] sm:$0xff]
  %v683 = vld [vmem:[%s7 + $0x20] sm:$0xff]
  %v684 = vld [vmem:[%s7 + $0x28] sm:$0xff]
  %v685 = vld [vmem:[%s7 + $0x30] sm:$0xff]
  %v686 = vld [vmem:[%s7 + $0x38] sm:$0xff]
  %v687 = vld [vmem:[%s7 + $0x40] sm:$0xff]
  %v688 = vld [vmem:[%s7 + $0x48] sm:$0xff]
  %v689 = vld [vmem:[%s7 + $0x50] sm:$0xff]
  %v690 = vld [vmem:[%s7 + $0x58] sm:$0xff]
  %v691 = vld [vmem:[%s7 + $0x60] sm:$0xff]
  %v692 = vld [vmem:[%s7 + $0x68] sm:$0xff]
  %v693 = vld [vmem:[%s7 + $0x70] sm:$0xff]
  %v694 = vld [vmem:[%s7 + $0x78] sm:$0xff]
  %v695 = vld [vmem:[%s7 + $0x80] sm:$0xff]
  %v696 = vld [vmem:[%s7 + $0x88] sm:$0xff]
  %v697 = vld [vmem:[%s7 + $0x90] sm:$0xff]
  %v698 = vld [vmem:[%s7 + $0x98] sm:$0xff]
  %v699 = vld [vmem:[%s7 + $0xa0] sm:$0xff]
  %v700 = vld [vmem:[%s7 + $0xa8] sm:$0xff]
  %v701 = vld [vmem:[%s7 + $0xb0] sm:$0xff]
  %v702 = vld [vmem:[%s7 + $0xb8] sm:$0xff]
  %v703 = vld [vmem:[%s7 + $0xc0] sm:$0xff]
  %v704 = vld [vmem:[%s7 + $0xc8] sm:$0xff]
  %v705 = vld [vmem:[%s7 + $0xd0] sm:$0xff]
  %v706 = vld [vmem:[%s7 + $0xd8] sm:$0xff]
  %v707 = vld [vmem:[%s7 + $0xe0] sm:$0xff]
  %v708 = vld [vmem:[%s7 + $0xe8] sm:$0xff]
  %v709 = vld [vmem:[%s7 + $0xf0] sm:$0xff]
  %v710 = vld [vmem:[%s7 + $0xf8] sm:$0xff]
  %v711 = vld [vmem:[%s7 + $0x100] sm:$0xff]
  %v712 = vld [vmem:[%s7 + $0x108] sm:$0xff]
  %v713 = vld [vmem:[%s7 + $0x110] sm:$0xff]
  %v714 = vld [vmem:[%s7 + $0x118] sm:$0xff]
  %v715 = vld [vmem:[%s7 + $0x120] sm:$0xff]
  %v716 = vld [vmem:[%s7 + $0x128] sm:$0xff]
  %v717 = vld [vmem:[%s7 + $0x130] sm:$0xff]
  %v718 = vld [vmem:[%s7 + $0x138] sm:$0xff]
  %v719 = vld [vmem:[%s7 + $0x140] sm:$0xff]
  %v720 = vld [vmem:[%s7 + $0x148] sm:$0xff]
  %v721 = vld [vmem:[%s7 + $0x150] sm:$0xff]
  %v722 = vld [vmem:[%s7 + $0x158] sm:$0xff]
  %v723 = vld [vmem:[%s7 + $0x160] sm:$0xff]
  %v724 = vld [vmem:[%s7 + $0x168] sm:$0xff]
  %v725 = vld [vmem:[%s7 + $0x170] sm:$0xff]
  %v726 = vld [vmem:[%s7 + $0x178] sm:$0xff]
  %v727 = vperm.slane %v41, 3
  %728 = vmatpush.msra.mxu0 %v694
  %729 = vmatpush.msra.mxu0 %v693
  %730 = vmatpush.msra.mxu0 %v692
  %731 = vmatpush.msra.mxu0 %v691
  %732 = vmatpush.msra.mxu0 %v690
  %733 = vmatpush.msra.mxu0 %v689
  %734 = vmatpush.msra.mxu0 %v688
  %735 = vmatpush.msra.mxu0 %v687
  %736 = vmatpush.msra.mxu0 %v686
  %737 = vmatpush.msra.mxu0 %v685
  %738 = vmatpush.msra.mxu0 %v684
  %739 = vmatpush.msra.mxu0 %v683
  %740 = vmatpush.msra.mxu0 %v682
  %741 = vmatpush.msra.mxu0 %v681
  %742 = vmatpush.msra.mxu0 %v680
  %743 = vmatpush.msra.mxu0 %v679
  %744 = vmatmul.f32.gmra.mxu0 %v673
  %v745 = vpop.f32.mrf.mxu0
  %v746 = vadd.f32 %v727, %v745
  %747 = vmatmul.f32.gmra.mxu0 %v676
  %v748 = vpop.f32.mrf.mxu0
  %v749 = vadd.f32 %v727, %v748
  %750 = vdwg.mxu0
  %751 = vmatpush.msra.mxu0 %v710
  %752 = vmatpush.msra.mxu0 %v709
  %753 = vmatpush.msra.mxu0 %v708
  %754 = vmatpush.msra.mxu0 %v707
  %755 = vmatpush.msra.mxu0 %v706
  %756 = vmatpush.msra.mxu0 %v705
  %757 = vmatpush.msra.mxu0 %v704
  %758 = vmatpush.msra.mxu0 %v703
  %759 = vmatpush.msra.mxu0 %v702
  %760 = vmatpush.msra.mxu0 %v701
  %761 = vmatpush.msra.mxu0 %v700
  %762 = vmatpush.msra.mxu0 %v699
  %763 = vmatpush.msra.mxu0 %v698
  %764 = vmatpush.msra.mxu0 %v697
  %765 = vmatpush.msra.mxu0 %v696
  %766 = vmatpush.msra.mxu0 %v695
  %767 = vmatmul.f32.gmra.mxu0 %v674
  %v768 = vpop.f32.mrf.mxu0
  %v769 = vadd.f32 %v746, %v768
  %770 = vmatmul.f32.gmra.mxu0 %v677
  %v771 = vpop.f32.mrf.mxu0
  %v772 = vadd.f32 %v749, %v771
  %773 = vdwg.mxu0
  %774 = vmatpush.msra.mxu0 %v726
  %775 = vmatpush.msra.mxu0 %v725
  %776 = vmatpush.msra.mxu0 %v724
  %777 = vmatpush.msra.mxu0 %v723
  %778 = vmatpush.msra.mxu0 %v722
  %779 = vmatpush.msra.mxu0 %v721
  %780 = vmatpush.msra.mxu0 %v720
  %781 = vmatpush.msra.mxu0 %v719
  %782 = vmatpush.msra.mxu0 %v718
  %783 = vmatpush.msra.mxu0 %v717
  %784 = vmatpush.msra.mxu0 %v716
  %785 = vmatpush.msra.mxu0 %v715
  %786 = vmatpush.msra.mxu0 %v714
  %787 = vmatpush.msra.mxu0 %v713
  %788 = vmatpush.msra.mxu0 %v712
  %789 = vmatpush.msra.mxu0 %v711
  %790 = vmatmul.f32.gmra.mxu0 %v675
  %v791 = vpop.f32.mrf.mxu0
  %v792 = vadd.f32 %v769, %v791
  %793 = vmatmul.f32.gmra.mxu0 %v678
  %v794 = vpop.f32.mrf.mxu0
  %v795 = vadd.f32 %v772, %v794
  %796 = vdwg.mxu0
  %vm797 = vcmask 261120
  %v798 = vsel %vm797, %v792, 0.0
  %799 = vadd.xlane.f32.xlu0 %v798
  %v800 = vpop.xlane.xlu0 %799
  %v801 = vsel %vm797, %v795, 0.0
  %802 = vadd.xlane.f32.xlu0 %v801
  %v803 = vpop.xlane.xlu0 %802
  %v804 = vrcp.pop 32.0
  %v805 = vmul.f32 32.0, %v804
  %v806 = vsub.f32 1.0, %v805
  %v807 = vmul.f32 %v804, %v806
  %v808 = vadd.f32 %v804, %v807
  %vm809 = vweird.f32 %v804
  %v810 = vsel %vm809, %v804, %v808
  %v811 = vmul.f32 %v800, %v810
  %v812 = vmul.f32 %v803, %v810
  %v813 = vsub.f32 %v792, %v811
  %v814 = vsub.f32 %v795, %v812
  %v815 = vmul.f32 %v813, %v813
  %v816 = vmul.f32 %v814, %v814
  %v817 = vsel %vm797, %v815, 0.0
  %818 = vadd.xlane.f32.xlu0 %v817
  %v819 = vpop.xlane.xlu0 %818
  %v820 = vsel %vm797, %v816, 0.0
  %821 = vadd.xlane.f32.xlu0 %v820
  %v822 = vpop.xlane.xlu0 %821
  %v823 = vmul.f32 %v819, %v810
  %v824 = vmul.f32 %v822, %v810
  %v825 = vadd.f32 %v823, 1e-05
  %v826 = vadd.f32 %v824, 1e-05
  %v827 = vrsqrt.pop %v825
  %v828 = vmul.f32 %v827, %v825
  %v829 = vmul.f32 %v828, %v827
  %v830 = vmul.f32 0.5, %v829
  %v831 = vsub.f32 1.5, %v830
  %v832 = vmul.f32 %v827, %v831
  %vm833 = vweird.f32 %v825
  %vm834 = vweird.f32 %v827
  %vm835 = vmor %vm833, %vm834
  %v836 = vsel %vm835, %v827, %v832
  %v837 = vrsqrt.pop %v826
  %v838 = vmul.f32 %v837, %v826
  %v839 = vmul.f32 %v838, %v837
  %v840 = vmul.f32 0.5, %v839
  %v841 = vsub.f32 1.5, %v840
  %v842 = vmul.f32 %v837, %v841
  %vm843 = vweird.f32 %v826
  %vm844 = vweird.f32 %v837
  %vm845 = vmor %vm843, %vm844
  %v846 = vsel %vm845, %v837, %v842
  %v847 = vmul.f32 %v813, %v836
  %v848 = vmul.f32 %v814, %v846
  %v849 = vperm.slane %v41, 4
  %v850 = vmul.f32 %v847, %v849
  %v851 = vmul.f32 %v848, %v849
  %v852 = vperm.slane %v41, 5
  %v853 = vadd.f32 %v850, %v852
  %v854 = vadd.f32 %v851, %v852
  %857 = vrot.lane.b32.xlu0 %v792, 96
  %v858 = vpop.permute.xlu0 %857
  %859 = vrot.lane.b32.xlu0 %v795, 96
  %v860 = vpop.permute.xlu0 %859
  %v863 = vsel %vm797, %v858, 0.0
  %864 = vadd.xlane.f32.xlu0 %v863
  %v865 = vpop.xlane.xlu0 %864
  %v866 = vsel %vm797, %v860, 0.0
  %867 = vadd.xlane.f32.xlu0 %v866
  %v868 = vpop.xlane.xlu0 %867
  %v869 = vmul.f32 %v865, %v810
  %v870 = vmul.f32 %v868, %v810
  %v871 = vsub.f32 %v792, %v869
  %v872 = vsub.f32 %v795, %v870
  %v873 = vmul.f32 %v871, %v871
  %v874 = vmul.f32 %v872, %v872
  %877 = vrot.lane.b32.xlu0 %v873, 96
  %v878 = vpop.permute.xlu0 %877
  %879 = vrot.lane.b32.xlu0 %v874, 96
  %v880 = vpop.permute.xlu0 %879
  %v883 = vsel %vm797, %v878, 0.0
  %884 = vadd.xlane.f32.xlu0 %v883
  %v885 = vpop.xlane.xlu0 %884
  %v886 = vsel %vm797, %v880, 0.0
  %887 = vadd.xlane.f32.xlu0 %v886
  %v888 = vpop.xlane.xlu0 %887
  %v889 = vmul.f32 %v885, %v810
  %v890 = vmul.f32 %v888, %v810
  %v891 = vadd.f32 %v889, 1e-05
  %v892 = vadd.f32 %v890, 1e-05
  %v893 = vrsqrt.pop %v891
  %v894 = vmul.f32 %v893, %v891
  %v895 = vmul.f32 %v894, %v893
  %v896 = vmul.f32 0.5, %v895
  %v897 = vsub.f32 1.5, %v896
  %v898 = vmul.f32 %v893, %v897
  %vm899 = vweird.f32 %v891
  %vm900 = vweird.f32 %v893
  %vm901 = vmor %vm899, %vm900
  %v902 = vsel %vm901, %v893, %v898
  %v903 = vrsqrt.pop %v892
  %v904 = vmul.f32 %v903, %v892
  %v905 = vmul.f32 %v904, %v903
  %v906 = vmul.f32 0.5, %v905
  %v907 = vsub.f32 1.5, %v906
  %v908 = vmul.f32 %v903, %v907
  %vm909 = vweird.f32 %v892
  %vm910 = vweird.f32 %v903
  %vm911 = vmor %vm909, %vm910
  %v912 = vsel %vm911, %v903, %v908
  %v913 = vmul.f32 %v871, %v902
  %v914 = vmul.f32 %v872, %v912
  %v915 = vmul.f32 %v913, %v849
  %v916 = vmul.f32 %v914, %v849
  %v917 = vadd.f32 %v915, %v852
  %v918 = vadd.f32 %v916, %v852
  %919 = vrot.lane.b32.xlu0 %v792, 64
  %v920 = vpop.permute.xlu0 %919
  %921 = vrot.lane.b32.xlu0 %v795, 64
  %v922 = vpop.permute.xlu0 %921
  %v925 = vsel %vm797, %v920, 0.0
  %926 = vadd.xlane.f32.xlu0 %v925
  %v927 = vpop.xlane.xlu0 %926
  %v928 = vsel %vm797, %v922, 0.0
  %929 = vadd.xlane.f32.xlu0 %v928
  %v930 = vpop.xlane.xlu0 %929
  %v931 = vmul.f32 %v927, %v810
  %v932 = vmul.f32 %v930, %v810
  %v933 = vsub.f32 %v792, %v931
  %v934 = vsub.f32 %v795, %v932
  %v935 = vmul.f32 %v933, %v933
  %v936 = vmul.f32 %v934, %v934
  %939 = vrot.lane.b32.xlu0 %v935, 64
  %v940 = vpop.permute.xlu0 %939
  %941 = vrot.lane.b32.xlu0 %v936, 64
  %v942 = vpop.permute.xlu0 %941
  %v945 = vsel %vm797, %v940, 0.0
  %946 = vadd.xlane.f32.xlu0 %v945
  %v947 = vpop.xlane.xlu0 %946
  %v948 = vsel %vm797, %v942, 0.0
  %949 = vadd.xlane.f32.xlu0 %v948
  %v950 = vpop.xlane.xlu0 %949
  %v951 = vmul.f32 %v947, %v810
  %v952 = vmul.f32 %v950, %v810
  %v953 = vadd.f32 %v951, 1e-05
  %v954 = vadd.f32 %v952, 1e-05
  %v955 = vrsqrt.pop %v953
  %v956 = vmul.f32 %v955, %v953
  %v957 = vmul.f32 %v956, %v955
  %v958 = vmul.f32 0.5, %v957
  %v959 = vsub.f32 1.5, %v958
  %v960 = vmul.f32 %v955, %v959
  %vm961 = vweird.f32 %v953
  %vm962 = vweird.f32 %v955
  %vm963 = vmor %vm961, %vm962
  %v964 = vsel %vm963, %v955, %v960
  %v965 = vrsqrt.pop %v954
  %v966 = vmul.f32 %v965, %v954
  %v967 = vmul.f32 %v966, %v965
  %v968 = vmul.f32 0.5, %v967
  %v969 = vsub.f32 1.5, %v968
  %v970 = vmul.f32 %v965, %v969
  %vm971 = vweird.f32 %v954
  %vm972 = vweird.f32 %v965
  %vm973 = vmor %vm971, %vm972
  %v974 = vsel %vm973, %v965, %v970
  %v975 = vmul.f32 %v933, %v964
  %v976 = vmul.f32 %v934, %v974
  %v977 = vmul.f32 %v975, %v849
  %v978 = vmul.f32 %v976, %v849
  %v979 = vadd.f32 %v977, %v852
  %v980 = vadd.f32 %v978, %v852
  %v981 = vsel %vm797, %v853, %v917
  %v982 = vsel %vm797, %v854, %v918
  %vm983 = vcmask 523264
  %v984 = vsel %vm983, %v981, %v979
  %v985 = vsel %vm983, %v982, %v980
  %v986 = vmax.f32 %v984, 0.0
  %v987 = vmax.f32 %v985, 0.0
  %v988 = vld [vmem:[%s8] sm:$0xff]
  %v989 = vld [vmem:[%s8 + $0x8] sm:$0xff]
  %v990 = vld [vmem:[%s8 + $0x10] sm:$0xff]
  %v991 = vld [vmem:[%s8 + $0x18] sm:$0xff]
  %v992 = vld [vmem:[%s8 + $0x20] sm:$0xff]
  %v993 = vld [vmem:[%s8 + $0x28] sm:$0xff]
  %v994 = vld [vmem:[%s8 + $0x30] sm:$0xff]
  %v995 = vld [vmem:[%s8 + $0x38] sm:$0xff]
  %v996 = vld [vmem:[%s8 + $0x40] sm:$0xff]
  %v997 = vld [vmem:[%s8 + $0x48] sm:$0xff]
  %v998 = vld [vmem:[%s8 + $0x50] sm:$0xff]
  %v999 = vld [vmem:[%s8 + $0x58] sm:$0xff]
  %v1000 = vperm.slane %v41, 6
  %v1002 = vsel %vm64, %v986, 0
  %v1005 = vsel %vm64, %v987, 0
  %1007 = vmatpush.msra.mxu0 0.0
  %1008 = vmatpush.msra.mxu0 0.0
  %1009 = vmatpush.msra.mxu0 0.0
  %1010 = vmatpush.msra.mxu0 0.0
  %1011 = vmatpush.msra.mxu0 %v999
  %1012 = vmatpush.msra.mxu0 %v998
  %1013 = vmatpush.msra.mxu0 %v997
  %1014 = vmatpush.msra.mxu0 %v996
  %1015 = vmatpush.msra.mxu0 %v995
  %1016 = vmatpush.msra.mxu0 %v994
  %1017 = vmatpush.msra.mxu0 %v993
  %1018 = vmatpush.msra.mxu0 %v992
  %1019 = vmatpush.msra.mxu0 %v991
  %1020 = vmatpush.msra.mxu0 %v990
  %1021 = vmatpush.msra.mxu0 %v989
  %1022 = vmatpush.msra.mxu0 %v988
  %1023 = vmatmul.f32.gmra.mxu0 %v1002
  %v1024 = vpop.f32.mrf.mxu0
  %v1025 = vadd.f32 %v1000, %v1024
  %1026 = vmatmul.f32.gmra.mxu0 %v1005
  %v1027 = vpop.f32.mrf.mxu0
  %v1028 = vadd.f32 %v1000, %v1027
  %1029 = vdwg.mxu0
  %v1030 = vsel %vm797, %v1025, 0.0
  %1031 = vadd.xlane.f32.xlu0 %v1030
  %v1032 = vpop.xlane.xlu0 %1031
  %v1033 = vsel %vm797, %v1028, 0.0
  %1034 = vadd.xlane.f32.xlu0 %v1033
  %v1035 = vpop.xlane.xlu0 %1034
  %v1036 = vmul.f32 %v1032, %v810
  %v1037 = vmul.f32 %v1035, %v810
  %v1038 = vsub.f32 %v1025, %v1036
  %v1039 = vsub.f32 %v1028, %v1037
  %v1040 = vmul.f32 %v1038, %v1038
  %v1041 = vmul.f32 %v1039, %v1039
  %v1042 = vsel %vm797, %v1040, 0.0
  %1043 = vadd.xlane.f32.xlu0 %v1042
  %v1044 = vpop.xlane.xlu0 %1043
  %v1045 = vsel %vm797, %v1041, 0.0
  %1046 = vadd.xlane.f32.xlu0 %v1045
  %v1047 = vpop.xlane.xlu0 %1046
  %v1048 = vmul.f32 %v1044, %v810
  %v1049 = vmul.f32 %v1047, %v810
  %v1050 = vadd.f32 %v1048, 1e-05
  %v1051 = vadd.f32 %v1049, 1e-05
  %v1052 = vrsqrt.pop %v1050
  %v1053 = vmul.f32 %v1052, %v1050
  %v1054 = vmul.f32 %v1053, %v1052
  %v1055 = vmul.f32 0.5, %v1054
  %v1056 = vsub.f32 1.5, %v1055
  %v1057 = vmul.f32 %v1052, %v1056
  %vm1058 = vweird.f32 %v1050
  %vm1059 = vweird.f32 %v1052
  %vm1060 = vmor %vm1058, %vm1059
  %v1061 = vsel %vm1060, %v1052, %v1057
  %v1062 = vrsqrt.pop %v1051
  %v1063 = vmul.f32 %v1062, %v1051
  %v1064 = vmul.f32 %v1063, %v1062
  %v1065 = vmul.f32 0.5, %v1064
  %v1066 = vsub.f32 1.5, %v1065
  %v1067 = vmul.f32 %v1062, %v1066
  %vm1068 = vweird.f32 %v1051
  %vm1069 = vweird.f32 %v1062
  %vm1070 = vmor %vm1068, %vm1069
  %v1071 = vsel %vm1070, %v1062, %v1067
  %v1072 = vmul.f32 %v1038, %v1061
  %v1073 = vmul.f32 %v1039, %v1071
  %v1074 = vperm.slane %v41, 7
  %v1075 = vmul.f32 %v1072, %v1074
  %v1076 = vmul.f32 %v1073, %v1074
  %v1077 = vperm.slane %v42, 0
  %v1078 = vadd.f32 %v1075, %v1077
  %v1079 = vadd.f32 %v1076, %v1077
  %1082 = vrot.lane.b32.xlu0 %v1025, 96
  %v1083 = vpop.permute.xlu0 %1082
  %1084 = vrot.lane.b32.xlu0 %v1028, 96
  %v1085 = vpop.permute.xlu0 %1084
  %v1088 = vsel %vm797, %v1083, 0.0
  %1089 = vadd.xlane.f32.xlu0 %v1088
  %v1090 = vpop.xlane.xlu0 %1089
  %v1091 = vsel %vm797, %v1085, 0.0
  %1092 = vadd.xlane.f32.xlu0 %v1091
  %v1093 = vpop.xlane.xlu0 %1092
  %v1094 = vmul.f32 %v1090, %v810
  %v1095 = vmul.f32 %v1093, %v810
  %v1096 = vsub.f32 %v1025, %v1094
  %v1097 = vsub.f32 %v1028, %v1095
  %v1098 = vmul.f32 %v1096, %v1096
  %v1099 = vmul.f32 %v1097, %v1097
  %1102 = vrot.lane.b32.xlu0 %v1098, 96
  %v1103 = vpop.permute.xlu0 %1102
  %1104 = vrot.lane.b32.xlu0 %v1099, 96
  %v1105 = vpop.permute.xlu0 %1104
  %v1108 = vsel %vm797, %v1103, 0.0
  %1109 = vadd.xlane.f32.xlu0 %v1108
  %v1110 = vpop.xlane.xlu0 %1109
  %v1111 = vsel %vm797, %v1105, 0.0
  %1112 = vadd.xlane.f32.xlu0 %v1111
  %v1113 = vpop.xlane.xlu0 %1112
  %v1114 = vmul.f32 %v1110, %v810
  %v1115 = vmul.f32 %v1113, %v810
  %v1116 = vadd.f32 %v1114, 1e-05
  %v1117 = vadd.f32 %v1115, 1e-05
  %v1118 = vrsqrt.pop %v1116
  %v1119 = vmul.f32 %v1118, %v1116
  %v1120 = vmul.f32 %v1119, %v1118
  %v1121 = vmul.f32 0.5, %v1120
  %v1122 = vsub.f32 1.5, %v1121
  %v1123 = vmul.f32 %v1118, %v1122
  %vm1124 = vweird.f32 %v1116
  %vm1125 = vweird.f32 %v1118
  %vm1126 = vmor %vm1124, %vm1125
  %v1127 = vsel %vm1126, %v1118, %v1123
  %v1128 = vrsqrt.pop %v1117
  %v1129 = vmul.f32 %v1128, %v1117
  %v1130 = vmul.f32 %v1129, %v1128
  %v1131 = vmul.f32 0.5, %v1130
  %v1132 = vsub.f32 1.5, %v1131
  %v1133 = vmul.f32 %v1128, %v1132
  %vm1134 = vweird.f32 %v1117
  %vm1135 = vweird.f32 %v1128
  %vm1136 = vmor %vm1134, %vm1135
  %v1137 = vsel %vm1136, %v1128, %v1133
  %v1138 = vmul.f32 %v1096, %v1127
  %v1139 = vmul.f32 %v1097, %v1137
  %v1140 = vmul.f32 %v1138, %v1074
  %v1141 = vmul.f32 %v1139, %v1074
  %v1142 = vadd.f32 %v1140, %v1077
  %v1143 = vadd.f32 %v1141, %v1077
  %1144 = vrot.lane.b32.xlu0 %v1025, 64
  %v1145 = vpop.permute.xlu0 %1144
  %1146 = vrot.lane.b32.xlu0 %v1028, 64
  %v1147 = vpop.permute.xlu0 %1146
  %v1150 = vsel %vm797, %v1145, 0.0
  %1151 = vadd.xlane.f32.xlu0 %v1150
  %v1152 = vpop.xlane.xlu0 %1151
  %v1153 = vsel %vm797, %v1147, 0.0
  %1154 = vadd.xlane.f32.xlu0 %v1153
  %v1155 = vpop.xlane.xlu0 %1154
  %v1156 = vmul.f32 %v1152, %v810
  %v1157 = vmul.f32 %v1155, %v810
  %v1158 = vsub.f32 %v1025, %v1156
  %v1159 = vsub.f32 %v1028, %v1157
  %v1160 = vmul.f32 %v1158, %v1158
  %v1161 = vmul.f32 %v1159, %v1159
  %1164 = vrot.lane.b32.xlu0 %v1160, 64
  %v1165 = vpop.permute.xlu0 %1164
  %1166 = vrot.lane.b32.xlu0 %v1161, 64
  %v1167 = vpop.permute.xlu0 %1166
  %v1170 = vsel %vm797, %v1165, 0.0
  %1171 = vadd.xlane.f32.xlu0 %v1170
  %v1172 = vpop.xlane.xlu0 %1171
  %v1173 = vsel %vm797, %v1167, 0.0
  %1174 = vadd.xlane.f32.xlu0 %v1173
  %v1175 = vpop.xlane.xlu0 %1174
  %v1176 = vmul.f32 %v1172, %v810
  %v1177 = vmul.f32 %v1175, %v810
  %v1178 = vadd.f32 %v1176, 1e-05
  %v1179 = vadd.f32 %v1177, 1e-05
  %v1180 = vrsqrt.pop %v1178
  %v1181 = vmul.f32 %v1180, %v1178
  %v1182 = vmul.f32 %v1181, %v1180
  %v1183 = vmul.f32 0.5, %v1182
  %v1184 = vsub.f32 1.5, %v1183
  %v1185 = vmul.f32 %v1180, %v1184
  %vm1186 = vweird.f32 %v1178
  %vm1187 = vweird.f32 %v1180
  %vm1188 = vmor %vm1186, %vm1187
  %v1189 = vsel %vm1188, %v1180, %v1185
  %v1190 = vrsqrt.pop %v1179
  %v1191 = vmul.f32 %v1190, %v1179
  %v1192 = vmul.f32 %v1191, %v1190
  %v1193 = vmul.f32 0.5, %v1192
  %v1194 = vsub.f32 1.5, %v1193
  %v1195 = vmul.f32 %v1190, %v1194
  %vm1196 = vweird.f32 %v1179
  %vm1197 = vweird.f32 %v1190
  %vm1198 = vmor %vm1196, %vm1197
  %v1199 = vsel %vm1198, %v1190, %v1195
  %v1200 = vmul.f32 %v1158, %v1189
  %v1201 = vmul.f32 %v1159, %v1199
  %v1202 = vmul.f32 %v1200, %v1074
  %v1203 = vmul.f32 %v1201, %v1074
  %v1204 = vadd.f32 %v1202, %v1077
  %v1205 = vadd.f32 %v1203, %v1077
  %v1206 = vsel %vm797, %v1078, %v1142
  %v1207 = vsel %vm797, %v1079, %v1143
  %v1208 = vsel %vm983, %v1206, %v1204
  %v1209 = vsel %vm983, %v1207, %v1205
  %v1210 = vmax.f32 %v1208, 0.0
  %v1211 = vmax.f32 %v1209, 0.0
  %v1212 = vld [vmem:[%s9] sm:$0xff]
  %v1213 = vld [vmem:[%s9 + $0x8] sm:$0xff]
  %v1214 = vld [vmem:[%s9 + $0x10] sm:$0xff]
  %v1215 = vld [vmem:[%s9 + $0x18] sm:$0xff]
  %v1216 = vld [vmem:[%s9 + $0x20] sm:$0xff]
  %v1217 = vld [vmem:[%s9 + $0x28] sm:$0xff]
  %v1218 = vld [vmem:[%s9 + $0x30] sm:$0xff]
  %v1219 = vld [vmem:[%s9 + $0x38] sm:$0xff]
  %v1220 = vld [vmem:[%s9 + $0x40] sm:$0xff]
  %v1221 = vld [vmem:[%s9 + $0x48] sm:$0xff]
  %v1222 = vld [vmem:[%s9 + $0x50] sm:$0xff]
  %v1223 = vld [vmem:[%s9 + $0x58] sm:$0xff]
  %v1224 = vperm.slane %v42, 1
  %v1226 = vsel %vm64, %v1210, 0
  %v1229 = vsel %vm64, %v1211, 0
  %1231 = vmatpush.msra.mxu0 0.0
  %1232 = vmatpush.msra.mxu0 0.0
  %1233 = vmatpush.msra.mxu0 0.0
  %1234 = vmatpush.msra.mxu0 0.0
  %1235 = vmatpush.msra.mxu0 %v1223
  %1236 = vmatpush.msra.mxu0 %v1222
  %1237 = vmatpush.msra.mxu0 %v1221
  %1238 = vmatpush.msra.mxu0 %v1220
  %1239 = vmatpush.msra.mxu0 %v1219
  %1240 = vmatpush.msra.mxu0 %v1218
  %1241 = vmatpush.msra.mxu0 %v1217
  %1242 = vmatpush.msra.mxu0 %v1216
  %1243 = vmatpush.msra.mxu0 %v1215
  %1244 = vmatpush.msra.mxu0 %v1214
  %1245 = vmatpush.msra.mxu0 %v1213
  %1246 = vmatpush.msra.mxu0 %v1212
  %1247 = vmatmul.f32.gmra.mxu0 %v1226
  %v1248 = vpop.f32.mrf.mxu0
  %v1249 = vadd.f32 %v1224, %v1248
  %1250 = vmatmul.f32.gmra.mxu0 %v1229
  %v1251 = vpop.f32.mrf.mxu0
  %v1252 = vadd.f32 %v1224, %v1251
  %1253 = vdwg.mxu0
  %v1254 = vld [vmem:[%s3] sm:$0xff]
  %v1255 = vld [vmem:[%s3 + $0x8] sm:$0xff]
  %1258 = vrot.lane.b32.xlu0 %v671, 2
  %v1259 = vpop.permute.xlu0 %1258
  %1260 = vrot.lane.b32.xlu0 %v672, 2
  %v1261 = vpop.permute.xlu0 %1260
  %vm1264 = vcmask 15360
  %v1265 = vsel %vm1264, %v669, %v1259
  %v1266 = vsel %vm1264, %v670, %v1261
  %vm1267 = vcmask 31744
  %1268 = vst.msk [vmem:[%s12] sm:$0xff] %vm1267, %v1265
  %1269 = vst.msk [vmem:[%s12 + $0x8] sm:$0xff] %vm1267, %v1266
  %v1270 = vadd.f32 %v1249, %v1254
  %v1271 = vadd.f32 %v1252, %v1255
  %vm1272 = vcmask 23552
  %1273 = vst.msk [vmem:[%s11] sm:$0xff] %vm1272, %v1270
  %1274 = vst.msk [vmem:[%s11 + $0x8] sm:$0xff] %vm1272, %v1271
  %1277 = vrot.lane.b32.xlu0 %v669, 126
  %v1278 = vpop.permute.xlu0 %1277
  %1279 = vrot.lane.b32.xlu0 %v670, 126
  %v1280 = vpop.permute.xlu0 %1279
  %v1283 = vsel %vm1264, %v1278, %v671
  %v1284 = vsel %vm1264, %v1280, %v672
  %s1285 = scalar_lea.vmem %s12, 16
  %1286 = vst.msk [vmem:[%s1285] sm:$0xff] %vm1267, %v1283
  %1287 = vst.msk [vmem:[%s1285 + $0x8] sm:$0xff] %vm1267, %v1284
  %1290 = vrot.lane.b32.xlu0 %v1254, 3
  %v1291 = vpop.permute.xlu0 %1290
  %1292 = vrot.lane.b32.xlu0 %v1255, 3
  %v1293 = vpop.permute.xlu0 %1292
  %v1296 = vadd.f32 %v1249, %v1291
  %v1297 = vadd.f32 %v1252, %v1293
  %1300 = vrot.lane.b32.xlu0 %v1296, 125
  %v1301 = vpop.permute.xlu0 %1300
  %1302 = vrot.lane.b32.xlu0 %v1297, 125
  %v1303 = vpop.permute.xlu0 %1302
  %s1306 = scalar_lea.vmem %s11, 16
  %1307 = vst.msk [vmem:[%s1306] sm:$0xff] %vm1272, %v1301
  %1308 = vst.msk [vmem:[%s1306 + $0x8] sm:$0xff] %vm1272, %v1303
  %1309 = vrot.lane.b32.xlu0 %v669, 124
  %v1310 = vpop.permute.xlu0 %1309
  %1311 = vrot.lane.b32.xlu0 %v670, 124
  %v1312 = vpop.permute.xlu0 %1311
  %1315 = vrot.lane.b32.xlu0 %v671, 126
  %v1316 = vpop.permute.xlu0 %1315
  %1317 = vrot.lane.b32.xlu0 %v672, 126
  %v1318 = vpop.permute.xlu0 %1317
  %v1321 = vsel %vm1264, %v1310, %v1316
  %v1322 = vsel %vm1264, %v1312, %v1318
  %s1323 = scalar_lea.vmem %s12, 32
  %1324 = vst.msk [vmem:[%s1323] sm:$0xff] %vm1267, %v1321
  %1325 = vst.msk [vmem:[%s1323 + $0x8] sm:$0xff] %vm1267, %v1322
  %1326 = vrot.lane.b32.xlu0 %v1254, 6
  %v1327 = vpop.permute.xlu0 %1326
  %1328 = vrot.lane.b32.xlu0 %v1255, 6
  %v1329 = vpop.permute.xlu0 %1328
  %v1332 = vadd.f32 %v1249, %v1327
  %v1333 = vadd.f32 %v1252, %v1329
  %1336 = vrot.lane.b32.xlu0 %v1332, 122
  %v1337 = vpop.permute.xlu0 %1336
  %1338 = vrot.lane.b32.xlu0 %v1333, 122
  %v1339 = vpop.permute.xlu0 %1338
  %s1342 = scalar_lea.vmem %s11, 32
  %1343 = vst.msk [vmem:[%s1342] sm:$0xff] %vm1272, %v1337
  %1344 = vst.msk [vmem:[%s1342 + $0x8] sm:$0xff] %vm1272, %v1339
  // Predicated region
  $region46: #{bev_decoder_head.1} parent=0 // pred_check
    _
  $region47: #{bev_decoder_head.1} parent=0 // pred_check_branch
    %1346 = sbr.rel (0) target = $region49
  $region48: #{bev_decoder_head.1} parent=0 // pred_region
    _
  $region49: #{bev_decoder_head.1} parent=0 // pred_fallthru
    _
  // Predicated region
  $region50: #{bev_decoder_head.1} parent=0 // pred_check
    _
  $region51: #{bev_decoder_head.1} parent=0 // pred_check_branch
    %1348 = sbr.rel (0) target = $region53
  $region52: #{bev_decoder_head.1} parent=0 // pred_region
    _
  $region53: #{bev_decoder_head.1} parent=0 // pred_fallthru
    _
  // Predicated region
  $region54: #{bev_decoder_head.1} parent=0 // pred_check
    _
  $region55: #{bev_decoder_head.1} parent=0 // pred_check_branch
    %1350 = sbr.rel (0) target = $region57
  $region56: #{bev_decoder_head.1} parent=0 // pred_region
    _
  $region57: #{bev_decoder_head.1} parent=0 // pred_fallthru
    _
  // Predicated region
  $region58: #{bev_decoder_head.1} parent=0 // pred_check
    _
  $region59: #{bev_decoder_head.1} parent=0 // pred_check_branch
    %1352 = sbr.rel (0) target = $region61
  $region60: #{bev_decoder_head.1} parent=0 // pred_region
    _
  $region61: #{bev_decoder_head.1} parent=0 // pred_fallthru
    _
  // Predicated region
  $region62: #{bev_decoder_head.1} parent=0 // pred_check
    _
  $region63: #{bev_decoder_head.1} parent=0 // pred_check_branch
    %1354 = sbr.rel (0) target = $region65
  $region64: #{bev_decoder_head.1} parent=0 // pred_region
    _
  $region65: #{bev_decoder_head.1} parent=0 // pred_fallthru
    _
  // Predicated region
  $region66: #{bev_decoder_head.1} parent=0 // pred_check
    _
  $region67: #{bev_decoder_head.1} parent=0 // pred_check_branch
    %1356 = sbr.rel (0) target = $region69
  $region68: #{bev_decoder_head.1} parent=0 // pred_region
    _
  $region69: #{bev_decoder_head.1} parent=0 // pred_fallthru
    _

</llo_original>
